<compile_context>
chip_gen: v7x
topology: tpu7x:2x2x1
jax: 0.10.0
libtpu: 0.0.40
codegen_flags: <defaults>
</compile_context>

<pallas_src>
import functools

import jax
import jax.numpy as jnp
import numpy as np
from jax.experimental import pallas as pl
from jax.experimental.pallas import tpu as pltpu


def _round_up(x, m):
    return (x + m - 1) // m * m


def double_conv_kernel(x_ref, w1_ref, b1_ref, w2_ref, b2_ref, m_ref, o_ref,
                       xb1_ref, p1_ref, xb2_ref, p2_ref,
                       *, W, nhw, front):
    """Fused (3x3 conv + folded BN + ReLU) x 2 for one batch group.

      x_ref : (cin_p, nhw)   batch group folded into lanes (pos = n*H*W + h*W + w)
      w?_ref: (c_out, 9*S?)  BN-folded weights, tap-major, K padded per tap to S?
      b?_ref: (c_out, 1)     folded BN shift (includes conv bias), f32
      m_ref : (9, nhw)       per-tap validity masks (kill cross-row/batch taps)
      o_ref : (c_out, nhw)   lane-dense output block
    scratch:
      xb?_ref: (S?, front + pad(nhw) + front)  zero-bordered f32 staging buffer
      p?_ref : (9*S?, nhw)                     im2col patches (compute dtype)
    """
    # Zero the staging buffers ONCE.  Per step only rows [0,rows) of the lane
    # window [front, front+nhw) are written; borders / padded rows are never
    # dirtied and scratch persists across grid steps.  NOTE: requires a single
    # core to walk the group axis ("arbitrary" semantics); with megacore
    # "parallel" sharding each core would need its own init.
    @pl.when(pl.program_id(0) == 0)
    def _init():
        xb1_ref[...] = jnp.zeros_like(xb1_ref)
        xb2_ref[...] = jnp.zeros_like(xb2_ref)

    def conv_stage(x_val, xb_ref, p_ref, w_ref, b_ref):
        rows = x_val.shape[0]      # staged (8-padded) input channels
        s = xb_ref.shape[0]        # tap block height (tile-aligned)
        # Stage the flat activation at the 128-aligned lane offset `front`
        # (aligned store).  Invariant: never write outside this window.
        xb_ref[0:rows, front:front + nhw] = x_val
        # im2col: 9 statically shifted lane-slices of the flat buffer.  Taps
        # crossing a row / batch boundary are zeroed by the masks (f32 VPU
        # math); the cast to the compute dtype happens on the aligned
        # full-tile store into p_ref.
        for ky in range(3):
            for kx in range(3):
                t = ky * 3 + kx
                start = front + (ky - 1) * W + (kx - 1)
                tap = xb_ref[:, start:start + nhw]
                if not (ky == 1 and kx == 1):   # center tap never needs masking
                    tap = tap * m_ref[t:t + 1, :]
                p_ref[t * s:(t + 1) * s, :] = tap.astype(p_ref.dtype)
        # One MXU matmul per stage: (c_out, 9*S) @ (9*S, nhw), f32 accumulation.
        acc = jnp.dot(w_ref[...], p_ref[...], preferred_element_type=jnp.float32)
        # BN scale pre-folded into w; epilogue is shift + ReLU in f32.
        return jnp.maximum(acc + b_ref[...], 0.0)

    h1 = conv_stage(x_ref[...], xb1_ref, p1_ref, w1_ref, b1_ref)
    out = conv_stage(h1, xb2_ref, p2_ref, w2_ref, b2_ref)
    o_ref[...] = out.astype(o_ref.dtype)


def fold_bn_into_conv(w_oihw, bias, gamma, beta, mean, var, *, pad_cin_to,
                      w_dtype, eps=1e-5):
    """Fold eval-mode BN into the conv (in f32), pad K per tap, cast last.

    w2d[o, t*pad_cin_to + ci] = w_oihw[o, ci, ky, kx] * gamma[o]/sqrt(var[o]+eps)
    shift[o] = (bias[o] - mean[o]) * scale[o] + beta[o]
    """
    scale = gamma / jnp.sqrt(var + eps)
    shift = (bias - mean) * scale + beta
    c_out, c_in = w_oihw.shape[0], w_oihw.shape[1]
    w = jnp.transpose(w_oihw, (0, 2, 3, 1)) * scale[:, None, None, None]  # (O,ky,kx,ci)
    if pad_cin_to > c_in:
        w = jnp.pad(w, ((0, 0), (0, 0), (0, 0), (0, pad_cin_to - c_in)))
    w2d = w.reshape(c_out, 9 * pad_cin_to).astype(w_dtype)
    return w2d, shift.reshape(c_out, 1).astype(jnp.float32)


def _tap_masks(nb, H, W):
    """(9, nb*H*W) validity masks: tap (ky,kx) must stay inside its own image."""
    p = jnp.arange(nb * H * W, dtype=jnp.int32)
    h = (p % (H * W)) // W
    w = p % W
    rows = []
    for ky in range(3):
        for kx in range(3):
            ok_h = jnp.logical_and(h + (ky - 1) >= 0, h + (ky - 1) < H)
            ok_w = jnp.logical_and(w + (kx - 1) >= 0, w + (kx - 1) < W)
            rows.append(jnp.logical_and(ok_h, ok_w))
    return jnp.stack(rows, axis=0).astype(jnp.float32)


def inconv_forward(x_nchw, params, *, compute_dtype=jnp.bfloat16):
    """Pallas forward for inconv.  Input/output in PyTorch NCHW layout."""
    N, c_in, H, W = x_nchw.shape
    c_out = params["w1_oihw"].shape[0]
    HW = H * W

    # Fold several batch elements into the lane axis so the whole (tiny) op is
    # a small number of wide, lane-dense grid steps (here: exactly one).
    target_lanes = 2048
    nb = max(1, min(N, target_lanes // HW))
    while N % nb:
        nb -= 1
    g = N // nb
    nhw = nb * HW

    # Sublane padding so every tap store lands on full native tiles:
    # (8,128) tiles for f32 patches, (16,128) for packed bf16 patches.
    is_bf16 = jnp.dtype(compute_dtype) == jnp.dtype(jnp.bfloat16)
    pad_unit = 16 if is_bf16 else 8
    cin_p = _round_up(c_in, 8)            # staged input channels (f32 rows)
    s1 = _round_up(cin_p, pad_unit)       # tap block height, stage 1
    s2 = _round_up(c_out, pad_unit)       # tap block height, stage 2

    w1, b1 = fold_bn_into_conv(params["w1_oihw"], params["b1"], params["g1"],
                               params["beta1"], params["m1"], params["v1"],
                               pad_cin_to=s1, w_dtype=compute_dtype)
    w2, b2 = fold_bn_into_conv(params["w2_oihw"], params["b2"], params["g2"],
                               params["beta2"], params["m2"], params["v2"],
                               pad_cin_to=s2, w_dtype=compute_dtype)

    # (N, C, H, W) -> (G, C_pad8, nb*HW): batch-major lanes, channels on sublanes.
    x_g = x_nchw.reshape(g, nb, c_in, HW).astype(jnp.float32)
    x_g = jnp.transpose(x_g, (0, 2, 1, 3)).reshape(g, c_in, nhw)
    if cin_p > c_in:
        x_g = jnp.pad(x_g, ((0, 0), (0, cin_p - c_in), (0, 0)))

    masks = _tap_masks(nb, H, W)                    # (9, nhw) f32

    front = _round_up(W + 1, 128)                   # 128-aligned zero border
    buf_len = front + _round_up(nhw, 128) + front   # staging buffer lanes

    kernel = functools.partial(double_conv_kernel, W=W, nhw=nhw, front=front)

    itm = jnp.dtype(compute_dtype).itemsize
    flops = 2 * 9 * (c_in * c_out + c_out * c_out) * HW * N
    bytes_accessed = int(x_g.size * 4 + g * c_out * nhw * 4
                         + (w1.size + w2.size) * itm
                         + (b1.size + b2.size + masks.size) * 4)

    out_g = pl.pallas_call(
        kernel,
        out_shape=jax.ShapeDtypeStruct((g, c_out, nhw), jnp.float32),
        grid_spec=pltpu.PrefetchScalarGridSpec(
            num_scalar_prefetch=0,
            grid=(g,),
            in_specs=[
                pl.BlockSpec((None, cin_p, nhw), lambda i: (i, 0, 0)),
                pl.BlockSpec((c_out, 9 * s1), lambda i: (0, 0)),
                pl.BlockSpec((c_out, 1), lambda i: (0, 0)),
                pl.BlockSpec((c_out, 9 * s2), lambda i: (0, 0)),
                pl.BlockSpec((c_out, 1), lambda i: (0, 0)),
                pl.BlockSpec((9, nhw), lambda i: (0, 0)),
            ],
            out_specs=pl.BlockSpec((None, c_out, nhw), lambda i: (i, 0, 0)),
            scratch_shapes=[
                pltpu.VMEM((s1, buf_len), jnp.float32),
                pltpu.VMEM((9 * s1, nhw), compute_dtype),
                pltpu.VMEM((s2, buf_len), jnp.float32),
                pltpu.VMEM((9 * s2, nhw), compute_dtype),
            ]),
        compiler_params=pltpu.CompilerParams(
            # "arbitrary": the zero-once scratch init assumes one core walks the
            # group axis sequentially (see kernel comment).
            dimension_semantics=("arbitrary",)),
        cost_estimate=pl.CostEstimate(flops=flops, transcendentals=0,
                                      bytes_accessed=bytes_accessed),
    )(x_g, w1, b1, w2, b2, masks)

    # (G, c_out, nb*HW) -> (N, c_out, H, W)
    out = out_g.reshape(g, c_out, nb, H, W)
    return jnp.transpose(out, (0, 2, 1, 3, 4)).reshape(N, c_out, H, W)


def reference_forward(x_nchw, params, eps=1e-5):
    """Pure-JAX reference matching PyTorch eval-mode semantics (NCHW / OIHW)."""
    def conv(x, w_oihw, b):
        y = jax.lax.conv_general_dilated(
            x, w_oihw, window_strides=(1, 1), padding=((1, 1), (1, 1)),
            dimension_numbers=("NCHW", "OIHW", "NCHW"))
        return y + b[None, :, None, None]

    def bn(x, g, be, m, v):
        return (x - m[None, :, None, None]) / jnp.sqrt(
            v[None, :, None, None] + eps) * g[None, :, None, None] + be[None, :, None, None]

    h = jax.nn.relu(bn(conv(x_nchw, params["w1_oihw"], params["b1"]),
                       params["g1"], params["beta1"], params["m1"], params["v1"]))
    h = jax.nn.relu(bn(conv(h, params["w2_oihw"], params["b2"]),
                       params["g2"], params["beta2"], params["m2"], params["v2"]))
    return h


def init_params(key, in_ch, out_ch):
    ks = jax.random.split(key, 12)
    w1 = jax.random.normal(ks[0], (out_ch, in_ch, 3, 3), jnp.float32) * 0.2   # OIHW
    b1 = jax.random.normal(ks[1], (out_ch,), jnp.float32) * 0.1
    g1 = 1.0 + 0.1 * jax.random.normal(ks[2], (out_ch,), jnp.float32)
    beta1 = 0.1 * jax.random.normal(ks[3], (out_ch,), jnp.float32)
    m1 = 0.1 * jax.random.normal(ks[4], (out_ch,), jnp.float32)
    v1 = 1.0 + 0.1 * jax.random.uniform(ks[5], (out_ch,), jnp.float32)

    w2 = jax.random.normal(ks[6], (out_ch, out_ch, 3, 3), jnp.float32) * 0.2  # OIHW
    b2 = jax.random.normal(ks[7], (out_ch,), jnp.float32) * 0.1
    g2 = 1.0 + 0.1 * jax.random.normal(ks[8], (out_ch,), jnp.float32)
    beta2 = 0.1 * jax.random.normal(ks[9], (out_ch,), jnp.float32)
    m2 = 0.1 * jax.random.normal(ks[10], (out_ch,), jnp.float32)
    v2 = 1.0 + 0.1 * jax.random.uniform(ks[11], (out_ch,), jnp.float32)

    return {
        "w1_oihw": w1, "b1": b1, "g1": g1, "beta1": beta1, "m1": m1, "v1": v1,
        "w2_oihw": w2, "b2": b2, "g2": g2, "beta2": beta2, "m2": m2, "v2": v2,
    }


if __name__ == "__main__":
    key = jax.random.PRNGKey(0)
    k_x, k_p = jax.random.split(key)

    N, in_ch, out_ch, H, W = 2, 4, 8, 16, 16
    x = jax.random.normal(k_x, (N, in_ch, H, W), jnp.float32)   # NCHW like PyTorch
    params = init_params(k_p, in_ch, out_ch)

    ref = jax.block_until_ready(reference_forward(x, params))

    # Fast path: bf16 MXU operands, f32 accumulation/epilogue.  Tolerance
    # reflects bf16 operand quantization (~2^-8 per operand over two stages).
    out_bf16 = jax.block_until_ready(
        inconv_forward(x, params, compute_dtype=jnp.bfloat16))
    assert out_bf16.shape == (N, out_ch, H, W), out_bf16.shape
    np.testing.assert_allclose(np.asarray(out_bf16), np.asarray(ref),
                               rtol=5e-2, atol=5e-2)

    # Full-f32 path: tight check of im2col / mask / BN-fold structure.
    out_f32 = jax.block_until_ready(
        inconv_forward(x, params, compute_dtype=jnp.float32))
    np.testing.assert_allclose(np.asarray(out_f32), np.asarray(ref),
                               rtol=1e-3, atol=1e-3)

    print("KERNEL_OK")
</pallas_src>

<mosaic_0001>
module attributes {stable_mosaic.version = 11 : i64} {
  func.func @double_conv_kernel(%arg0: i32, %arg1: memref<1x8x512xf32, #tpu.memory_space<vmem>>, %arg2: memref<8x144xbf16, #tpu.memory_space<vmem>>, %arg3: memref<8x1xf32, #tpu.memory_space<vmem>>, %arg4: memref<8x144xbf16, #tpu.memory_space<vmem>>, %arg5: memref<8x1xf32, #tpu.memory_space<vmem>>, %arg6: memref<9x512xf32, #tpu.memory_space<vmem>>, %arg7: memref<1x8x512xf32, #tpu.memory_space<vmem>>, %arg8: memref<16x768xf32, #tpu.memory_space<vmem>>, %arg9: memref<144x512xbf16, #tpu.memory_space<vmem>>, %arg10: memref<16x768xf32, #tpu.memory_space<vmem>>, %arg11: memref<144x512xbf16, #tpu.memory_space<vmem>>) attributes {dimension_semantics = [#tpu.dimension_semantics<arbitrary>], iteration_bounds = array<i64: 1>, scalar_prefetch = 0 : i64, scratch_operands = 4 : i64, tpu.core_type = #tpu.core_type<tc>, window_params = [{transform_indices = @transform_0, window_bounds = array<i64: 1, 8, 512>}, {pipeline_mode = #tpu.pipeline_mode<synchronous>, transform_indices = @transform_1, window_bounds = array<i64: 8, 144>}, {pipeline_mode = #tpu.pipeline_mode<synchronous>, transform_indices = @transform_2, window_bounds = array<i64: 8, 1>}, {pipeline_mode = #tpu.pipeline_mode<synchronous>, transform_indices = @transform_3, window_bounds = array<i64: 8, 144>}, {pipeline_mode = #tpu.pipeline_mode<synchronous>, transform_indices = @transform_4, window_bounds = array<i64: 8, 1>}, {pipeline_mode = #tpu.pipeline_mode<synchronous>, transform_indices = @transform_5, window_bounds = array<i64: 9, 512>}, {transform_indices = @transform_6, window_bounds = array<i64: 1, 8, 512>}]} {
    %c0_i32 = arith.constant 0 : i32
    %0 = arith.cmpi eq, %arg0, %c0_i32 : i32
    %1 = arith.extui %0 : i1 to i32
    %c0_i32_0 = arith.constant 0 : i32
    %2 = arith.cmpi ne, %1, %c0_i32_0 : i32
    scf.if %2 {
      %cst_107 = arith.constant 0.000000e+00 : f32
      %128 = vector.broadcast %cst_107 : f32 to vector<16x768xf32>
      %c0_108 = arith.constant 0 : index
      %c0_109 = arith.constant 0 : index
      %129 = vector.load %arg8[%c0_108, %c0_109] : memref<16x768xf32, #tpu.memory_space<vmem>>, vector<16x768xf32>
      tpu.vector_store %arg8[%c0_108, %c0_109], %128 {strides = array<i32>} : memref<16x768xf32, #tpu.memory_space<vmem>>, vector<16x768xf32>,
      %cst_110 = arith.constant 0.000000e+00 : f32
      %130 = vector.broadcast %cst_110 : f32 to vector<16x768xf32>
      %c0_111 = arith.constant 0 : index
      %c0_112 = arith.constant 0 : index
      %131 = vector.load %arg10[%c0_111, %c0_112] : memref<16x768xf32, #tpu.memory_space<vmem>>, vector<16x768xf32>
      tpu.vector_store %arg10[%c0_111, %c0_112], %130 {strides = array<i32>} : memref<16x768xf32, #tpu.memory_space<vmem>>, vector<16x768xf32>,
    } else {
    }
    %c0 = arith.constant 0 : index
    %c0_1 = arith.constant 0 : index
    %c0_2 = arith.constant 0 : index
    %3 = vector.load %arg1[%c0, %c0_1, %c0_2] : memref<1x8x512xf32, #tpu.memory_space<vmem>>, vector<1x8x512xf32>
    %4 = vector.shape_cast %3 : vector<1x8x512xf32> to vector<8x512xf32>
    %c0_3 = arith.constant 0 : index
    %c128 = arith.constant 128 : index
    %5 = vector.load %arg8[%c0_3, %c128] : memref<16x768xf32, #tpu.memory_space<vmem>>, vector<8x512xf32>
    tpu.vector_store %arg8[%c0_3, %c128], %4 {strides = array<i32>} : memref<16x768xf32, #tpu.memory_space<vmem>>, vector<8x512xf32>,
    %c0_4 = arith.constant 0 : index
    %c111 = arith.constant 111 : index
    %6 = vector.load %arg8[%c0_4, %c111] : memref<16x768xf32, #tpu.memory_space<vmem>>, vector<16x512xf32>
    %c0_5 = arith.constant 0 : index
    %c0_6 = arith.constant 0 : index
    %7 = vector.load %arg6[%c0_5, %c0_6] : memref<9x512xf32, #tpu.memory_space<vmem>>, vector<1x512xf32>
    %8 = vector.broadcast %7 : vector<1x512xf32> to vector<16x512xf32>
    %9 = arith.mulf %6, %8 : vector<16x512xf32>
    %10 = arith.truncf %9 : vector<16x512xf32> to vector<16x512xbf16>
    %c0_7 = arith.constant 0 : index
    %c0_8 = arith.constant 0 : index
    %11 = vector.load %arg9[%c0_7, %c0_8] : memref<144x512xbf16, #tpu.memory_space<vmem>>, vector<16x512xbf16>
    tpu.vector_store %arg9[%c0_7, %c0_8], %10 {strides = array<i32>} : memref<144x512xbf16, #tpu.memory_space<vmem>>, vector<16x512xbf16>,
    %c0_9 = arith.constant 0 : index
    %c112 = arith.constant 112 : index
    %12 = vector.load %arg8[%c0_9, %c112] : memref<16x768xf32, #tpu.memory_space<vmem>>, vector<16x512xf32>
    %c1 = arith.constant 1 : index
    %c0_10 = arith.constant 0 : index
    %13 = vector.load %arg6[%c1, %c0_10] : memref<9x512xf32, #tpu.memory_space<vmem>>, vector<1x512xf32>
    %14 = vector.broadcast %13 : vector<1x512xf32> to vector<16x512xf32>
    %15 = arith.mulf %12, %14 : vector<16x512xf32>
    %16 = arith.truncf %15 : vector<16x512xf32> to vector<16x512xbf16>
    %c16 = arith.constant 16 : index
    %c0_11 = arith.constant 0 : index
    %17 = vector.load %arg9[%c16, %c0_11] : memref<144x512xbf16, #tpu.memory_space<vmem>>, vector<16x512xbf16>
    tpu.vector_store %arg9[%c16, %c0_11], %16 {strides = array<i32>} : memref<144x512xbf16, #tpu.memory_space<vmem>>, vector<16x512xbf16>,
    %c0_12 = arith.constant 0 : index
    %c113 = arith.constant 113 : index
    %18 = vector.load %arg8[%c0_12, %c113] : memref<16x768xf32, #tpu.memory_space<vmem>>, vector<16x512xf32>
    %c2 = arith.constant 2 : index
    %c0_13 = arith.constant 0 : index
    %19 = vector.load %arg6[%c2, %c0_13] : memref<9x512xf32, #tpu.memory_space<vmem>>, vector<1x512xf32>
    %20 = vector.broadcast %19 : vector<1x512xf32> to vector<16x512xf32>
    %21 = arith.mulf %18, %20 : vector<16x512xf32>
    %22 = arith.truncf %21 : vector<16x512xf32> to vector<16x512xbf16>
    %c32 = arith.constant 32 : index
    %c0_14 = arith.constant 0 : index
    %23 = vector.load %arg9[%c32, %c0_14] : memref<144x512xbf16, #tpu.memory_space<vmem>>, vector<16x512xbf16>
    tpu.vector_store %arg9[%c32, %c0_14], %22 {strides = array<i32>} : memref<144x512xbf16, #tpu.memory_space<vmem>>, vector<16x512xbf16>,
    %c0_15 = arith.constant 0 : index
    %c127 = arith.constant 127 : index
    %24 = vector.load %arg8[%c0_15, %c127] : memref<16x768xf32, #tpu.memory_space<vmem>>, vector<16x512xf32>
    %c3 = arith.constant 3 : index
    %c0_16 = arith.constant 0 : index
    %25 = vector.load %arg6[%c3, %c0_16] : memref<9x512xf32, #tpu.memory_space<vmem>>, vector<1x512xf32>
    %26 = vector.broadcast %25 : vector<1x512xf32> to vector<16x512xf32>
    %27 = arith.mulf %24, %26 : vector<16x512xf32>
    %28 = arith.truncf %27 : vector<16x512xf32> to vector<16x512xbf16>
    %c48 = arith.constant 48 : index
    %c0_17 = arith.constant 0 : index
    %29 = vector.load %arg9[%c48, %c0_17] : memref<144x512xbf16, #tpu.memory_space<vmem>>, vector<16x512xbf16>
    tpu.vector_store %arg9[%c48, %c0_17], %28 {strides = array<i32>} : memref<144x512xbf16, #tpu.memory_space<vmem>>, vector<16x512xbf16>,
    %c0_18 = arith.constant 0 : index
    %c128_19 = arith.constant 128 : index
    %30 = vector.load %arg8[%c0_18, %c128_19] : memref<16x768xf32, #tpu.memory_space<vmem>>, vector<16x512xf32>
    %31 = arith.truncf %30 : vector<16x512xf32> to vector<16x512xbf16>
    %c64 = arith.constant 64 : index
    %c0_20 = arith.constant 0 : index
    %32 = vector.load %arg9[%c64, %c0_20] : memref<144x512xbf16, #tpu.memory_space<vmem>>, vector<16x512xbf16>
    tpu.vector_store %arg9[%c64, %c0_20], %31 {strides = array<i32>} : memref<144x512xbf16, #tpu.memory_space<vmem>>, vector<16x512xbf16>,
    %c0_21 = arith.constant 0 : index
    %c129 = arith.constant 129 : index
    %33 = vector.load %arg8[%c0_21, %c129] : memref<16x768xf32, #tpu.memory_space<vmem>>, vector<16x512xf32>
    %c5 = arith.constant 5 : index
    %c0_22 = arith.constant 0 : index
    %34 = vector.load %arg6[%c5, %c0_22] : memref<9x512xf32, #tpu.memory_space<vmem>>, vector<1x512xf32>
    %35 = vector.broadcast %34 : vector<1x512xf32> to vector<16x512xf32>
    %36 = arith.mulf %33, %35 : vector<16x512xf32>
    %37 = arith.truncf %36 : vector<16x512xf32> to vector<16x512xbf16>
    %c80 = arith.constant 80 : index
    %c0_23 = arith.constant 0 : index
    %38 = vector.load %arg9[%c80, %c0_23] : memref<144x512xbf16, #tpu.memory_space<vmem>>, vector<16x512xbf16>
    tpu.vector_store %arg9[%c80, %c0_23], %37 {strides = array<i32>} : memref<144x512xbf16, #tpu.memory_space<vmem>>, vector<16x512xbf16>,
    %c0_24 = arith.constant 0 : index
    %c143 = arith.constant 143 : index
    %39 = vector.load %arg8[%c0_24, %c143] : memref<16x768xf32, #tpu.memory_space<vmem>>, vector<16x512xf32>
    %c6 = arith.constant 6 : index
    %c0_25 = arith.constant 0 : index
    %40 = vector.load %arg6[%c6, %c0_25] : memref<9x512xf32, #tpu.memory_space<vmem>>, vector<1x512xf32>
    %41 = vector.broadcast %40 : vector<1x512xf32> to vector<16x512xf32>
    %42 = arith.mulf %39, %41 : vector<16x512xf32>
    %43 = arith.truncf %42 : vector<16x512xf32> to vector<16x512xbf16>
    %c96 = arith.constant 96 : index
    %c0_26 = arith.constant 0 : index
    %44 = vector.load %arg9[%c96, %c0_26] : memref<144x512xbf16, #tpu.memory_space<vmem>>, vector<16x512xbf16>
    tpu.vector_store %arg9[%c96, %c0_26], %43 {strides = array<i32>} : memref<144x512xbf16, #tpu.memory_space<vmem>>, vector<16x512xbf16>,
    %c0_27 = arith.constant 0 : index
    %c144 = arith.constant 144 : index
    %45 = vector.load %arg8[%c0_27, %c144] : memref<16x768xf32, #tpu.memory_space<vmem>>, vector<16x512xf32>
    %c7 = arith.constant 7 : index
    %c0_28 = arith.constant 0 : index
    %46 = vector.load %arg6[%c7, %c0_28] : memref<9x512xf32, #tpu.memory_space<vmem>>, vector<1x512xf32>
    %47 = vector.broadcast %46 : vector<1x512xf32> to vector<16x512xf32>
    %48 = arith.mulf %45, %47 : vector<16x512xf32>
    %49 = arith.truncf %48 : vector<16x512xf32> to vector<16x512xbf16>
    %c112_29 = arith.constant 112 : index
    %c0_30 = arith.constant 0 : index
    %50 = vector.load %arg9[%c112_29, %c0_30] : memref<144x512xbf16, #tpu.memory_space<vmem>>, vector<16x512xbf16>
    tpu.vector_store %arg9[%c112_29, %c0_30], %49 {strides = array<i32>} : memref<144x512xbf16, #tpu.memory_space<vmem>>, vector<16x512xbf16>,
    %c0_31 = arith.constant 0 : index
    %c145 = arith.constant 145 : index
    %51 = vector.load %arg8[%c0_31, %c145] : memref<16x768xf32, #tpu.memory_space<vmem>>, vector<16x512xf32>
    %c8 = arith.constant 8 : index
    %c0_32 = arith.constant 0 : index
    %52 = vector.load %arg6[%c8, %c0_32] : memref<9x512xf32, #tpu.memory_space<vmem>>, vector<1x512xf32>
    %53 = vector.broadcast %52 : vector<1x512xf32> to vector<16x512xf32>
    %54 = arith.mulf %51, %53 : vector<16x512xf32>
    %55 = arith.truncf %54 : vector<16x512xf32> to vector<16x512xbf16>
    %c128_33 = arith.constant 128 : index
    %c0_34 = arith.constant 0 : index
    %56 = vector.load %arg9[%c128_33, %c0_34] : memref<144x512xbf16, #tpu.memory_space<vmem>>, vector<16x512xbf16>
    tpu.vector_store %arg9[%c128_33, %c0_34], %55 {strides = array<i32>} : memref<144x512xbf16, #tpu.memory_space<vmem>>, vector<16x512xbf16>,
    %c0_35 = arith.constant 0 : index
    %c0_36 = arith.constant 0 : index
    %57 = vector.load %arg2[%c0_35, %c0_36] : memref<8x144xbf16, #tpu.memory_space<vmem>>, vector<8x144xbf16>
    %c0_37 = arith.constant 0 : index
    %c0_38 = arith.constant 0 : index
    %58 = vector.load %arg9[%c0_37, %c0_38] : memref<144x512xbf16, #tpu.memory_space<vmem>>, vector<144x512xbf16>
    %cst = arith.constant dense<0.000000e+00> : vector<8x512xf32>
    %59 = tpu.matmul %57, %58, %cst {dimension_numbers = #tpu.dot_dimension_numbers<[1], [0], [0], [1], [0, 0, 1, 1], [], []>} : vector<8x144xbf16>, vector<144x512xbf16>, vector<8x512xf32> -> vector<8x512xf32>
    %c0_39 = arith.constant 0 : index
    %c0_40 = arith.constant 0 : index
    %60 = vector.load %arg3[%c0_39, %c0_40] : memref<8x1xf32, #tpu.memory_space<vmem>>, vector<8x1xf32>
    %61 = vector.broadcast %60 : vector<8x1xf32> to vector<8x512xf32>
    %62 = arith.addf %59, %61 : vector<8x512xf32>
    %cst_41 = arith.constant 0.000000e+00 : f32
    %63 = vector.broadcast %cst_41 : f32 to vector<8x512xf32>
    %64 = arith.maximumf %62, %63 : vector<8x512xf32>
    %c0_42 = arith.constant 0 : index
    %c128_43 = arith.constant 128 : index
    %65 = vector.load %arg10[%c0_42, %c128_43] : memref<16x768xf32, #tpu.memory_space<vmem>>, vector<8x512xf32>
    tpu.vector_store %arg10[%c0_42, %c128_43], %64 {strides = array<i32>} : memref<16x768xf32, #tpu.memory_space<vmem>>, vector<8x512xf32>,
    %c0_44 = arith.constant 0 : index
    %c111_45 = arith.constant 111 : index
    %66 = vector.load %arg10[%c0_44, %c111_45] : memref<16x768xf32, #tpu.memory_space<vmem>>, vector<16x512xf32>
    %c0_46 = arith.constant 0 : index
    %c0_47 = arith.constant 0 : index
    %67 = vector.load %arg6[%c0_46, %c0_47] : memref<9x512xf32, #tpu.memory_space<vmem>>, vector<1x512xf32>
    %68 = vector.broadcast %67 : vector<1x512xf32> to vector<16x512xf32>
    %69 = arith.mulf %66, %68 : vector<16x512xf32>
    %70 = arith.truncf %69 : vector<16x512xf32> to vector<16x512xbf16>
    %c0_48 = arith.constant 0 : index
    %c0_49 = arith.constant 0 : index
    %71 = vector.load %arg11[%c0_48, %c0_49] : memref<144x512xbf16, #tpu.memory_space<vmem>>, vector<16x512xbf16>
    tpu.vector_store %arg11[%c0_48, %c0_49], %70 {strides = array<i32>} : memref<144x512xbf16, #tpu.memory_space<vmem>>, vector<16x512xbf16>,
    %c0_50 = arith.constant 0 : index
    %c112_51 = arith.constant 112 : index
    %72 = vector.load %arg10[%c0_50, %c112_51] : memref<16x768xf32, #tpu.memory_space<vmem>>, vector<16x512xf32>
    %c1_52 = arith.constant 1 : index
    %c0_53 = arith.constant 0 : index
    %73 = vector.load %arg6[%c1_52, %c0_53] : memref<9x512xf32, #tpu.memory_space<vmem>>, vector<1x512xf32>
    %74 = vector.broadcast %73 : vector<1x512xf32> to vector<16x512xf32>
    %75 = arith.mulf %72, %74 : vector<16x512xf32>
    %76 = arith.truncf %75 : vector<16x512xf32> to vector<16x512xbf16>
    %c16_54 = arith.constant 16 : index
    %c0_55 = arith.constant 0 : index
    %77 = vector.load %arg11[%c16_54, %c0_55] : memref<144x512xbf16, #tpu.memory_space<vmem>>, vector<16x512xbf16>
    tpu.vector_store %arg11[%c16_54, %c0_55], %76 {strides = array<i32>} : memref<144x512xbf16, #tpu.memory_space<vmem>>, vector<16x512xbf16>,
    %c0_56 = arith.constant 0 : index
    %c113_57 = arith.constant 113 : index
    %78 = vector.load %arg10[%c0_56, %c113_57] : memref<16x768xf32, #tpu.memory_space<vmem>>, vector<16x512xf32>
    %c2_58 = arith.constant 2 : index
    %c0_59 = arith.constant 0 : index
    %79 = vector.load %arg6[%c2_58, %c0_59] : memref<9x512xf32, #tpu.memory_space<vmem>>, vector<1x512xf32>
    %80 = vector.broadcast %79 : vector<1x512xf32> to vector<16x512xf32>
    %81 = arith.mulf %78, %80 : vector<16x512xf32>
    %82 = arith.truncf %81 : vector<16x512xf32> to vector<16x512xbf16>
    %c32_60 = arith.constant 32 : index
    %c0_61 = arith.constant 0 : index
    %83 = vector.load %arg11[%c32_60, %c0_61] : memref<144x512xbf16, #tpu.memory_space<vmem>>, vector<16x512xbf16>
    tpu.vector_store %arg11[%c32_60, %c0_61], %82 {strides = array<i32>} : memref<144x512xbf16, #tpu.memory_space<vmem>>, vector<16x512xbf16>,
    %c0_62 = arith.constant 0 : index
    %c127_63 = arith.constant 127 : index
    %84 = vector.load %arg10[%c0_62, %c127_63] : memref<16x768xf32, #tpu.memory_space<vmem>>, vector<16x512xf32>
    %c3_64 = arith.constant 3 : index
    %c0_65 = arith.constant 0 : index
    %85 = vector.load %arg6[%c3_64, %c0_65] : memref<9x512xf32, #tpu.memory_space<vmem>>, vector<1x512xf32>
    %86 = vector.broadcast %85 : vector<1x512xf32> to vector<16x512xf32>
    %87 = arith.mulf %84, %86 : vector<16x512xf32>
    %88 = arith.truncf %87 : vector<16x512xf32> to vector<16x512xbf16>
    %c48_66 = arith.constant 48 : index
    %c0_67 = arith.constant 0 : index
    %89 = vector.load %arg11[%c48_66, %c0_67] : memref<144x512xbf16, #tpu.memory_space<vmem>>, vector<16x512xbf16>
    tpu.vector_store %arg11[%c48_66, %c0_67], %88 {strides = array<i32>} : memref<144x512xbf16, #tpu.memory_space<vmem>>, vector<16x512xbf16>,
    %c0_68 = arith.constant 0 : index
    %c128_69 = arith.constant 128 : index
    %90 = vector.load %arg10[%c0_68, %c128_69] : memref<16x768xf32, #tpu.memory_space<vmem>>, vector<16x512xf32>
    %91 = arith.truncf %90 : vector<16x512xf32> to vector<16x512xbf16>
    %c64_70 = arith.constant 64 : index
    %c0_71 = arith.constant 0 : index
    %92 = vector.load %arg11[%c64_70, %c0_71] : memref<144x512xbf16, #tpu.memory_space<vmem>>, vector<16x512xbf16>
    tpu.vector_store %arg11[%c64_70, %c0_71], %91 {strides = array<i32>} : memref<144x512xbf16, #tpu.memory_space<vmem>>, vector<16x512xbf16>,
    %c0_72 = arith.constant 0 : index
    %c129_73 = arith.constant 129 : index
    %93 = vector.load %arg10[%c0_72, %c129_73] : memref<16x768xf32, #tpu.memory_space<vmem>>, vector<16x512xf32>
    %c5_74 = arith.constant 5 : index
    %c0_75 = arith.constant 0 : index
    %94 = vector.load %arg6[%c5_74, %c0_75] : memref<9x512xf32, #tpu.memory_space<vmem>>, vector<1x512xf32>
    %95 = vector.broadcast %94 : vector<1x512xf32> to vector<16x512xf32>
    %96 = arith.mulf %93, %95 : vector<16x512xf32>
    %97 = arith.truncf %96 : vector<16x512xf32> to vector<16x512xbf16>
    %c80_76 = arith.constant 80 : index
    %c0_77 = arith.constant 0 : index
    %98 = vector.load %arg11[%c80_76, %c0_77] : memref<144x512xbf16, #tpu.memory_space<vmem>>, vector<16x512xbf16>
    tpu.vector_store %arg11[%c80_76, %c0_77], %97 {strides = array<i32>} : memref<144x512xbf16, #tpu.memory_space<vmem>>, vector<16x512xbf16>,
    %c0_78 = arith.constant 0 : index
    %c143_79 = arith.constant 143 : index
    %99 = vector.load %arg10[%c0_78, %c143_79] : memref<16x768xf32, #tpu.memory_space<vmem>>, vector<16x512xf32>
    %c6_80 = arith.constant 6 : index
    %c0_81 = arith.constant 0 : index
    %100 = vector.load %arg6[%c6_80, %c0_81] : memref<9x512xf32, #tpu.memory_space<vmem>>, vector<1x512xf32>
    %101 = vector.broadcast %100 : vector<1x512xf32> to vector<16x512xf32>
    %102 = arith.mulf %99, %101 : vector<16x512xf32>
    %103 = arith.truncf %102 : vector<16x512xf32> to vector<16x512xbf16>
    %c96_82 = arith.constant 96 : index
    %c0_83 = arith.constant 0 : index
    %104 = vector.load %arg11[%c96_82, %c0_83] : memref<144x512xbf16, #tpu.memory_space<vmem>>, vector<16x512xbf16>
    tpu.vector_store %arg11[%c96_82, %c0_83], %103 {strides = array<i32>} : memref<144x512xbf16, #tpu.memory_space<vmem>>, vector<16x512xbf16>,
    %c0_84 = arith.constant 0 : index
    %c144_85 = arith.constant 144 : index
    %105 = vector.load %arg10[%c0_84, %c144_85] : memref<16x768xf32, #tpu.memory_space<vmem>>, vector<16x512xf32>
    %c7_86 = arith.constant 7 : index
    %c0_87 = arith.constant 0 : index
    %106 = vector.load %arg6[%c7_86, %c0_87] : memref<9x512xf32, #tpu.memory_space<vmem>>, vector<1x512xf32>
    %107 = vector.broadcast %106 : vector<1x512xf32> to vector<16x512xf32>
    %108 = arith.mulf %105, %107 : vector<16x512xf32>
    %109 = arith.truncf %108 : vector<16x512xf32> to vector<16x512xbf16>
    %c112_88 = arith.constant 112 : index
    %c0_89 = arith.constant 0 : index
    %110 = vector.load %arg11[%c112_88, %c0_89] : memref<144x512xbf16, #tpu.memory_space<vmem>>, vector<16x512xbf16>
    tpu.vector_store %arg11[%c112_88, %c0_89], %109 {strides = array<i32>} : memref<144x512xbf16, #tpu.memory_space<vmem>>, vector<16x512xbf16>,
    %c0_90 = arith.constant 0 : index
    %c145_91 = arith.constant 145 : index
    %111 = vector.load %arg10[%c0_90, %c145_91] : memref<16x768xf32, #tpu.memory_space<vmem>>, vector<16x512xf32>
    %c8_92 = arith.constant 8 : index
    %c0_93 = arith.constant 0 : index
    %112 = vector.load %arg6[%c8_92, %c0_93] : memref<9x512xf32, #tpu.memory_space<vmem>>, vector<1x512xf32>
    %113 = vector.broadcast %112 : vector<1x512xf32> to vector<16x512xf32>
    %114 = arith.mulf %111, %113 : vector<16x512xf32>
    %115 = arith.truncf %114 : vector<16x512xf32> to vector<16x512xbf16>
    %c128_94 = arith.constant 128 : index
    %c0_95 = arith.constant 0 : index
    %116 = vector.load %arg11[%c128_94, %c0_95] : memref<144x512xbf16, #tpu.memory_space<vmem>>, vector<16x512xbf16>
    tpu.vector_store %arg11[%c128_94, %c0_95], %115 {strides = array<i32>} : memref<144x512xbf16, #tpu.memory_space<vmem>>, vector<16x512xbf16>,
    %c0_96 = arith.constant 0 : index
    %c0_97 = arith.constant 0 : index
    %117 = vector.load %arg4[%c0_96, %c0_97] : memref<8x144xbf16, #tpu.memory_space<vmem>>, vector<8x144xbf16>
    %c0_98 = arith.constant 0 : index
    %c0_99 = arith.constant 0 : index
    %118 = vector.load %arg11[%c0_98, %c0_99] : memref<144x512xbf16, #tpu.memory_space<vmem>>, vector<144x512xbf16>
    %cst_100 = arith.constant dense<0.000000e+00> : vector<8x512xf32>
    %119 = tpu.matmul %117, %118, %cst_100 {dimension_numbers = #tpu.dot_dimension_numbers<[1], [0], [0], [1], [0, 0, 1, 1], [], []>} : vector<8x144xbf16>, vector<144x512xbf16>, vector<8x512xf32> -> vector<8x512xf32>
    %c0_101 = arith.constant 0 : index
    %c0_102 = arith.constant 0 : index
    %120 = vector.load %arg5[%c0_101, %c0_102] : memref<8x1xf32, #tpu.memory_space<vmem>>, vector<8x1xf32>
    %121 = vector.broadcast %120 : vector<8x1xf32> to vector<8x512xf32>
    %122 = arith.addf %119, %121 : vector<8x512xf32>
    %cst_103 = arith.constant 0.000000e+00 : f32
    %123 = vector.broadcast %cst_103 : f32 to vector<8x512xf32>
    %124 = arith.maximumf %122, %123 : vector<8x512xf32>
    %c0_104 = arith.constant 0 : index
    %c0_105 = arith.constant 0 : index
    %c0_106 = arith.constant 0 : index
    %125 = vector.load %arg7[%c0_104, %c0_105, %c0_106] : memref<1x8x512xf32, #tpu.memory_space<vmem>>, vector<1x8x512xf32>
    %126 = vector.shape_cast %125 : vector<1x8x512xf32> to vector<8x512xf32>
    %127 = vector.shape_cast %124 : vector<8x512xf32> to vector<1x8x512xf32>
    tpu.vector_store %arg7[%c0_104, %c0_105, %c0_106], %127 {strides = array<i32>} : memref<1x8x512xf32, #tpu.memory_space<vmem>>, vector<1x8x512xf32>,
    return
  }
  func.func @transform_0(%arg0: i32) -> (i32, i32, i32) {
    %c0_i32 = arith.constant 0 : i32
    %c0_i32_0 = arith.constant 0 : i32
    %c0_i32_1 = arith.constant 0 : i32
    return %arg0, %c0_i32, %c0_i32_0 : i32, i32, i32
  }
  func.func @transform_1(%arg0: i32) -> (i32, i32) {
    %c0_i32 = arith.constant 0 : i32
    %c0_i32_0 = arith.constant 0 : i32
    %c0_i32_1 = arith.constant 0 : i32
    return %c0_i32, %c0_i32_0 : i32, i32
  }
  func.func @transform_2(%arg0: i32) -> (i32, i32) {
    %c0_i32 = arith.constant 0 : i32
    %c0_i32_0 = arith.constant 0 : i32
    %c0_i32_1 = arith.constant 0 : i32
    return %c0_i32, %c0_i32_0 : i32, i32
  }
  func.func @transform_3(%arg0: i32) -> (i32, i32) {
    %c0_i32 = arith.constant 0 : i32
    %c0_i32_0 = arith.constant 0 : i32
    %c0_i32_1 = arith.constant 0 : i32
    return %c0_i32, %c0_i32_0 : i32, i32
  }
  func.func @transform_4(%arg0: i32) -> (i32, i32) {
    %c0_i32 = arith.constant 0 : i32
    %c0_i32_0 = arith.constant 0 : i32
    %c0_i32_1 = arith.constant 0 : i32
    return %c0_i32, %c0_i32_0 : i32, i32
  }
  func.func @transform_5(%arg0: i32) -> (i32, i32) {
    %c0_i32 = arith.constant 0 : i32
    %c0_i32_0 = arith.constant 0 : i32
    %c0_i32_1 = arith.constant 0 : i32
    return %c0_i32, %c0_i32_0 : i32, i32
  }
  func.func @transform_6(%arg0: i32) -> (i32, i32, i32) {
    %c0_i32 = arith.constant 0 : i32
    %c0_i32_0 = arith.constant 0 : i32
    %c0_i32_1 = arith.constant 0 : i32
    return %arg0, %c0_i32, %c0_i32_0 : i32, i32, i32
  }
}

</mosaic_0001>

<llo_original>
// kernel: tpu_custom_call.1
$region0: #{tpu_custom_call.1}
  #allocation0 [shape = 'u32[]', space=smem, size = 0x4, offset = 0x4, fixed_abs, tag = 'smem constant byte address 0x4 - core index']
  #allocation1 [shape = 'u32[144,128]{1,0:T(1,128)}', space=vmem, size = 0x12000, scoped, tag = 'internal scratch']
  #allocation2 [shape = 'f32[16,768]{1,0:T(8,128)}', space=vmem, size = 0xc000, scoped, tag = 'scratch operand']
  #allocation3 [shape = 'bf16[144,512]{1,0:T(16,128)(2,1)}', space=vmem, size = 0x24000, scoped, tag = 'scratch operand']
  #allocation4 [shape = 'f32[16,768]{1,0:T(8,128)}', space=vmem, size = 0xc000, scoped, tag = 'scratch operand']
  #allocation5 [shape = 'bf16[144,512]{1,0:T(16,128)(2,1)}', space=vmem, size = 0x24000, scoped, tag = 'scratch operand']
  %s0 = inlined_call_operand.hbm [shape: f32[1,8,512], index: 0, kind: input, shape index: {}]
  %s1 = inlined_call_operand.vmem [shape: bf16[8,144], index: 1, kind: input, shape index: {}]
  %s2 = inlined_call_operand.vmem [shape: f32[8,1], index: 2, kind: input, shape index: {}]
  %s3 = inlined_call_operand.vmem [shape: bf16[8,144], index: 3, kind: input, shape index: {}]
  %s4 = inlined_call_operand.vmem [shape: f32[8,1], index: 4, kind: input, shape index: {}]
  %s5 = inlined_call_operand.hbm [shape: f32[9,512], index: 5, kind: input, shape index: {}]
  %s6 = inlined_call_operand.hbm [shape: f32[1,8,512], index: 6, kind: output, shape index: {}]
  %s7 = sld [smem:[#allocation0]]
  $region46: #{tpu_custom_call.1} parent=0
    _
  %s9 = ssub.s32 1, %s7
  %s10 = scalar_select 0, %s9, %s7
  $region1: #{tpu_custom_call.1} parent=0
    #allocation6 [shape = 'u8[16384]{0}', space=vmem, size = 0x4000, scoped, tag = 'input window, operand 0, single buffered']
    #allocation7 [shape = 's32[1]{0}', space=sflag, size = 0x4, scoped, tag = 'scoped memory for tpu_custom_call.1']
    #allocation8 [shape = 's32[1]{0}', space=sflag, size = 0x4, scoped, tag = 'scoped memory for tpu_custom_call.1']
    #allocation9 [shape = 'u8[32768]{0}', space=vmem, size = 0x8000, scoped, tag = 'input window, operand 5, single buffered']
    #allocation10 [shape = 's32[1]{0}', space=sflag, size = 0x4, scoped, tag = 'scoped memory for tpu_custom_call.1']
    #allocation11 [shape = 'u8[16384]{0}', space=vmem, size = 0x4000, scoped, tag = 'output window, operand 0, single buffered']
    %11 = vsyncpa [#allocation7], 0
    %12 = vsyncpa [#allocation10], 0
    %13 = vsyncpa [#allocation8], 0
    // Predicated region
    $region2: #{tpu_custom_call.1} parent=1 // pred_check
      _
    $region3: #{tpu_custom_call.1} parent=1 // pred_check_branch
      %15 = sbr.rel (0) target = $region5
    $region4: #{tpu_custom_call.1} parent=1 // pred_region
      %s17 = ssub.s32 512, 512
      %18 = vsyncadd [#allocation7], %s17
      %s20 = sshll.u32 [#allocation6], 4
      %s21 = int_to_ptr.vmem [resolvable:$true] %s20
      %23 = dma.hbm_to_vmem [thread:$0]  %s0, 512, %s21, [#allocation7]
    $region5: #{tpu_custom_call.1} parent=1 // pred_fallthru
      _
    // Predicated region
    $region6: #{tpu_custom_call.1} parent=1 // pred_check
      _
    $region7: #{tpu_custom_call.1} parent=1 // pred_check_branch
      %25 = sbr.rel (0) target = $region9
    $region8: #{tpu_custom_call.1} parent=1 // pred_region
      _
    $region9: #{tpu_custom_call.1} parent=1 // pred_fallthru
      _
    // Predicated region
    $region10: #{tpu_custom_call.1} parent=1 // pred_check
      _
    $region11: #{tpu_custom_call.1} parent=1 // pred_check_branch
      %27 = sbr.rel (0) target = $region13
    $region12: #{tpu_custom_call.1} parent=1 // pred_region
      _
    $region13: #{tpu_custom_call.1} parent=1 // pred_fallthru
      _
    // Predicated region
    $region14: #{tpu_custom_call.1} parent=1 // pred_check
      _
    $region15: #{tpu_custom_call.1} parent=1 // pred_check_branch
      %29 = sbr.rel (0) target = $region17
    $region16: #{tpu_custom_call.1} parent=1 // pred_region
      _
    $region17: #{tpu_custom_call.1} parent=1 // pred_fallthru
      _
    // Predicated region
    $region18: #{tpu_custom_call.1} parent=1 // pred_check
      _
    $region19: #{tpu_custom_call.1} parent=1 // pred_check_branch
      %31 = sbr.rel (0) target = $region21
    $region20: #{tpu_custom_call.1} parent=1 // pred_region
      _
    $region21: #{tpu_custom_call.1} parent=1 // pred_fallthru
      _
    // Predicated region
    $region22: #{tpu_custom_call.1} parent=1 // pred_check
      _
    $region23: #{tpu_custom_call.1} parent=1 // pred_check_branch
      %33 = sbr.rel (0) target = $region25
    $region24: #{tpu_custom_call.1} parent=1 // pred_region
      %s35 = ssub.s32 1024, 1024
      %36 = vsyncadd [#allocation10], %s35
      %s37 = sshll.u32 [#allocation9], 4
      %s38 = int_to_ptr.vmem [resolvable:$true] %s37
      %43 = dma.hbm_to_vmem [thread:$0]  %s5, 1024, %s38, [#allocation10], 512, 512, 32
    $region25: #{tpu_custom_call.1} parent=1 // pred_fallthru
      _
    // Predicated region
    $region26: #{tpu_custom_call.1} parent=1 // pred_check
      _
    $region27: #{tpu_custom_call.1} parent=1 // pred_check_branch
      %45 = sbr.rel (0) target = $region29
    $region28: #{tpu_custom_call.1} parent=1 // pred_region
      %46 = dma.done [#allocation7], 512
    $region29: #{tpu_custom_call.1} parent=1 // pred_fallthru
      _
    // Predicated region
    $region30: #{tpu_custom_call.1} parent=1 // pred_check
      _
    $region31: #{tpu_custom_call.1} parent=1 // pred_check_branch
      %48 = sbr.rel (0) target = $region33
    $region32: #{tpu_custom_call.1} parent=1 // pred_region
      %49 = dma.done [#allocation10], 1024
    $region33: #{tpu_custom_call.1} parent=1 // pred_fallthru
      _
    %p51 = scmp.eq.s32.totalorder 0, 0
    // Predicated region
    $region34: #{tpu_custom_call.1} parent=1 // pred_check
      %p52 = pneg %p51
    $region35: #{tpu_custom_call.1} parent=1 // pred_check_branch
      %54 = sbr.rel (%p52) target = $region37
    $region36: #{tpu_custom_call.1} parent=1 // pred_region
      %55 = vst [vmem:[#allocation2] sm:$0xff] 0.0
      %56 = vst [vmem:[#allocation2 + $0x8] sm:$0xff] 0.0
      %57 = vst [vmem:[#allocation2 + $0x10] sm:$0xff] 0.0
      %58 = vst [vmem:[#allocation2 + $0x18] sm:$0xff] 0.0
      %59 = vst [vmem:[#allocation2 + $0x20] sm:$0xff] 0.0
      %60 = vst [vmem:[#allocation2 + $0x28] sm:$0xff] 0.0
      %61 = vst [vmem:[#allocation2 + $0x30] sm:$0xff] 0.0
      %62 = vst [vmem:[#allocation2 + $0x38] sm:$0xff] 0.0
      %63 = vst [vmem:[#allocation2 + $0x40] sm:$0xff] 0.0
      %64 = vst [vmem:[#allocation2 + $0x48] sm:$0xff] 0.0
      %65 = vst [vmem:[#allocation2 + $0x50] sm:$0xff] 0.0
      %66 = vst [vmem:[#allocation2 + $0x58] sm:$0xff] 0.0
      %67 = vst [vmem:[#allocation4] sm:$0xff] 0.0
      %68 = vst [vmem:[#allocation4 + $0x8] sm:$0xff] 0.0
      %69 = vst [vmem:[#allocation4 + $0x10] sm:$0xff] 0.0
      %70 = vst [vmem:[#allocation4 + $0x18] sm:$0xff] 0.0
      %71 = vst [vmem:[#allocation4 + $0x20] sm:$0xff] 0.0
      %72 = vst [vmem:[#allocation4 + $0x28] sm:$0xff] 0.0
      %73 = vst [vmem:[#allocation4 + $0x30] sm:$0xff] 0.0
      %74 = vst [vmem:[#allocation4 + $0x38] sm:$0xff] 0.0
      %75 = vst [vmem:[#allocation4 + $0x40] sm:$0xff] 0.0
      %76 = vst [vmem:[#allocation4 + $0x48] sm:$0xff] 0.0
      %77 = vst [vmem:[#allocation4 + $0x50] sm:$0xff] 0.0
      %78 = vst [vmem:[#allocation4 + $0x58] sm:$0xff] 0.0
    $region37: #{tpu_custom_call.1} parent=1 // pred_fallthru
      _
    %v79 = vld [vmem:[#allocation6] sm:$0xff]
    %v80 = vld [vmem:[#allocation6 + $0x8] sm:$0xff]
    %v81 = vld [vmem:[#allocation6 + $0x10] sm:$0xff]
    %v82 = vld [vmem:[#allocation6 + $0x18] sm:$0xff]
    %83 = vst [vmem:[#allocation2 + $0x8] sm:$0xff] %v79
    %84 = vst [vmem:[#allocation2 + $0x10] sm:$0xff] %v80
    %85 = vst [vmem:[#allocation2 + $0x18] sm:$0xff] %v81
    %86 = vst [vmem:[#allocation2 + $0x20] sm:$0xff] %v82
    %v87 = vld [vmem:[#allocation2] sm:$0xff]
    %v88 = vld [vmem:[#allocation2 + $0x8] sm:$0xff]
    %v89 = vld [vmem:[#allocation2 + $0x10] sm:$0xff]
    %v90 = vld [vmem:[#allocation2 + $0x18] sm:$0xff]
    %v91 = vld [vmem:[#allocation2 + $0x20] sm:$0xff]
    %v92 = vld [vmem:[#allocation2 + $0x30] sm:$0xff]
    %v93 = vld [vmem:[#allocation2 + $0x38] sm:$0xff]
    %v94 = vld [vmem:[#allocation2 + $0x40] sm:$0xff]
    %v95 = vld [vmem:[#allocation2 + $0x48] sm:$0xff]
    %v96 = vld [vmem:[#allocation2 + $0x50] sm:$0xff]
    %v97 = vld [vmem:[#allocation9] ss:$8 sm:$0xf]
    %v99 = vlaneseq
    %v100 = vshrl.u32 %v99, 7
    %v101 = vsub.s32 0, %v100
    %v102 = vrot.slane %v97, %v101
    %v103 = vlaneseq
    %v104 = vshrl.u32 %v103, 7
    %v105 = vsub.s32 1, %v104
    %v106 = vrot.slane %v97, %v105
    %v107 = vlaneseq
    %v108 = vshrl.u32 %v107, 7
    %v109 = vsub.s32 2, %v108
    %v110 = vrot.slane %v97, %v109
    %v111 = vlaneseq
    %v112 = vshrl.u32 %v111, 7
    %v113 = vsub.s32 3, %v112
    %v114 = vrot.slane %v97, %v113
    %115 = vrot.lane.b32.xlu0 %v102, 111
    %v116 = vpop.permute.xlu0 %115
    %117 = vrot.lane.b32.xlu0 %v106, 111
    %v118 = vpop.permute.xlu0 %117
    %119 = vrot.lane.b32.xlu0 %v110, 111
    %v120 = vpop.permute.xlu0 %119
    %121 = vrot.lane.b32.xlu0 %v114, 111
    %v122 = vpop.permute.xlu0 %121
    %vm123 = vcmask 908288
    %v124 = vsel %vm123, %v116, %v118
    %v125 = vsel %vm123, %v118, %v120
    %v126 = vsel %vm123, %v120, %v122
    %v132 = vmul.f32 %v87, %v116
    %v133 = vmul.f32 %v88, %v124
    %v134 = vmul.f32 %v89, %v125
    %v135 = vmul.f32 %v90, %v126
    %v136 = vmul.f32 %v91, %v122
    %v137 = vmul.f32 %v92, %v116
    %v138 = vmul.f32 %v93, %v124
    %v139 = vmul.f32 %v94, %v125
    %v140 = vmul.f32 %v95, %v126
    %v141 = vmul.f32 %v96, %v122
    %v142 = vpack.c.bf16 %v137, %v132
    %v143 = vpack.c.bf16 %v138, %v133
    %v144 = vpack.c.bf16 %v139, %v134
    %v145 = vpack.c.bf16 %v140, %v135
    %v146 = vpack.c.bf16 %v141, %v136
    %152 = vrot.lane.b32.xlu0 %v142, 17
    %v153 = vpop.permute.xlu0 %152
    %154 = vrot.lane.b32.xlu0 %v143, 17
    %v155 = vpop.permute.xlu0 %154
    %156 = vrot.lane.b32.xlu0 %v144, 17
    %v157 = vpop.permute.xlu0 %156
    %158 = vrot.lane.b32.xlu0 %v145, 17
    %v159 = vpop.permute.xlu0 %158
    %160 = vrot.lane.b32.xlu0 %v146, 17
    %v161 = vpop.permute.xlu0 %160
    %vm162 = vcmask 138240
    %v163 = vsel %vm162, %v153, %v155
    %v164 = vsel %vm162, %v155, %v157
    %v165 = vsel %vm162, %v157, %v159
    %v166 = vsel %vm162, %v159, %v161
    %171 = vst [vmem:[#allocation3] sm:$0xff] %v163
    %172 = vst [vmem:[#allocation3 + $0x8] sm:$0xff] %v164
    %173 = vst [vmem:[#allocation3 + $0x10] sm:$0xff] %v165
    %174 = vst [vmem:[#allocation3 + $0x18] sm:$0xff] %v166
    %v175 = vld [vmem:[#allocation2] sm:$0xff]
    %v176 = vld [vmem:[#allocation2 + $0x8] sm:$0xff]
    %v177 = vld [vmem:[#allocation2 + $0x10] sm:$0xff]
    %v178 = vld [vmem:[#allocation2 + $0x18] sm:$0xff]
    %v179 = vld [vmem:[#allocation2 + $0x20] sm:$0xff]
    %v180 = vld [vmem:[#allocation2 + $0x30] sm:$0xff]
    %v181 = vld [vmem:[#allocation2 + $0x38] sm:$0xff]
    %v182 = vld [vmem:[#allocation2 + $0x40] sm:$0xff]
    %v183 = vld [vmem:[#allocation2 + $0x48] sm:$0xff]
    %v184 = vld [vmem:[#allocation2 + $0x50] sm:$0xff]
    %s185 = scalar_lea.vmem [#allocation9], 1
    %v186 = vld [vmem:[%s185] ss:$8 sm:$0xf]
    %v188 = vlaneseq
    %v189 = vshrl.u32 %v188, 7
    %v190 = vsub.s32 0, %v189
    %v191 = vrot.slane %v186, %v190
    %v192 = vlaneseq
    %v193 = vshrl.u32 %v192, 7
    %v194 = vsub.s32 1, %v193
    %v195 = vrot.slane %v186, %v194
    %v196 = vlaneseq
    %v197 = vshrl.u32 %v196, 7
    %v198 = vsub.s32 2, %v197
    %v199 = vrot.slane %v186, %v198
    %v200 = vlaneseq
    %v201 = vshrl.u32 %v200, 7
    %v202 = vsub.s32 3, %v201
    %v203 = vrot.slane %v186, %v202
    %204 = vrot.lane.b32.xlu0 %v191, 112
    %v205 = vpop.permute.xlu0 %204
    %206 = vrot.lane.b32.xlu0 %v195, 112
    %v207 = vpop.permute.xlu0 %206
    %208 = vrot.lane.b32.xlu0 %v199, 112
    %v209 = vpop.permute.xlu0 %208
    %210 = vrot.lane.b32.xlu0 %v203, 112
    %v211 = vpop.permute.xlu0 %210
    %vm212 = vcmask 916480
    %v213 = vsel %vm212, %v205, %v207
    %v214 = vsel %vm212, %v207, %v209
    %v215 = vsel %vm212, %v209, %v211
    %v221 = vmul.f32 %v175, %v205
    %v222 = vmul.f32 %v176, %v213
    %v223 = vmul.f32 %v177, %v214
    %v224 = vmul.f32 %v178, %v215
    %v225 = vmul.f32 %v179, %v211
    %v226 = vmul.f32 %v180, %v205
    %v227 = vmul.f32 %v181, %v213
    %v228 = vmul.f32 %v182, %v214
    %v229 = vmul.f32 %v183, %v215
    %v230 = vmul.f32 %v184, %v211
    %v231 = vpack.c.bf16 %v226, %v221
    %v232 = vpack.c.bf16 %v227, %v222
    %v233 = vpack.c.bf16 %v228, %v223
    %v234 = vpack.c.bf16 %v229, %v224
    %v235 = vpack.c.bf16 %v230, %v225
    %241 = vrot.lane.b32.xlu0 %v231, 16
    %v242 = vpop.permute.xlu0 %241
    %243 = vrot.lane.b32.xlu0 %v232, 16
    %v244 = vpop.permute.xlu0 %243
    %245 = vrot.lane.b32.xlu0 %v233, 16
    %v246 = vpop.permute.xlu0 %245
    %247 = vrot.lane.b32.xlu0 %v234, 16
    %v248 = vpop.permute.xlu0 %247
    %249 = vrot.lane.b32.xlu0 %v235, 16
    %v250 = vpop.permute.xlu0 %249
    %vm251 = vcmask 130048
    %v252 = vsel %vm251, %v242, %v244
    %v253 = vsel %vm251, %v244, %v246
    %v254 = vsel %vm251, %v246, %v248
    %v255 = vsel %vm251, %v248, %v250
    %260 = vst [vmem:[#allocation3 + $0x20] sm:$0xff] %v252
    %261 = vst [vmem:[#allocation3 + $0x28] sm:$0xff] %v253
    %262 = vst [vmem:[#allocation3 + $0x30] sm:$0xff] %v254
    %263 = vst [vmem:[#allocation3 + $0x38] sm:$0xff] %v255
    %v264 = vld [vmem:[#allocation2] sm:$0xff]
    %v265 = vld [vmem:[#allocation2 + $0x8] sm:$0xff]
    %v266 = vld [vmem:[#allocation2 + $0x10] sm:$0xff]
    %v267 = vld [vmem:[#allocation2 + $0x18] sm:$0xff]
    %v268 = vld [vmem:[#allocation2 + $0x20] sm:$0xff]
    %v269 = vld [vmem:[#allocation2 + $0x30] sm:$0xff]
    %v270 = vld [vmem:[#allocation2 + $0x38] sm:$0xff]
    %v271 = vld [vmem:[#allocation2 + $0x40] sm:$0xff]
    %v272 = vld [vmem:[#allocation2 + $0x48] sm:$0xff]
    %v273 = vld [vmem:[#allocation2 + $0x50] sm:$0xff]
    %s274 = scalar_lea.vmem [#allocation9], 2
    %v275 = vld [vmem:[%s274] ss:$8 sm:$0xf]
    %v277 = vlaneseq
    %v278 = vshrl.u32 %v277, 7
    %v279 = vsub.s32 0, %v278
    %v280 = vrot.slane %v275, %v279
    %v281 = vlaneseq
    %v282 = vshrl.u32 %v281, 7
    %v283 = vsub.s32 1, %v282
    %v284 = vrot.slane %v275, %v283
    %v285 = vlaneseq
    %v286 = vshrl.u32 %v285, 7
    %v287 = vsub.s32 2, %v286
    %v288 = vrot.slane %v275, %v287
    %v289 = vlaneseq
    %v290 = vshrl.u32 %v289, 7
    %v291 = vsub.s32 3, %v290
    %v292 = vrot.slane %v275, %v291
    %293 = vrot.lane.b32.xlu0 %v280, 113
    %v294 = vpop.permute.xlu0 %293
    %295 = vrot.lane.b32.xlu0 %v284, 113
    %v296 = vpop.permute.xlu0 %295
    %297 = vrot.lane.b32.xlu0 %v288, 113
    %v298 = vpop.permute.xlu0 %297
    %299 = vrot.lane.b32.xlu0 %v292, 113
    %v300 = vpop.permute.xlu0 %299
    %vm301 = vcmask 924672
    %v302 = vsel %vm301, %v294, %v296
    %v303 = vsel %vm301, %v296, %v298
    %v304 = vsel %vm301, %v298, %v300
    %v310 = vmul.f32 %v264, %v294
    %v311 = vmul.f32 %v265, %v302
    %v312 = vmul.f32 %v266, %v303
    %v313 = vmul.f32 %v267, %v304
    %v314 = vmul.f32 %v268, %v300
    %v315 = vmul.f32 %v269, %v294
    %v316 = vmul.f32 %v270, %v302
    %v317 = vmul.f32 %v271, %v303
    %v318 = vmul.f32 %v272, %v304
    %v319 = vmul.f32 %v273, %v300
    %v320 = vpack.c.bf16 %v315, %v310
    %v321 = vpack.c.bf16 %v316, %v311
    %v322 = vpack.c.bf16 %v317, %v312
    %v323 = vpack.c.bf16 %v318, %v313
    %v324 = vpack.c.bf16 %v319, %v314
    %330 = vrot.lane.b32.xlu0 %v320, 15
    %v331 = vpop.permute.xlu0 %330
    %332 = vrot.lane.b32.xlu0 %v321, 15
    %v333 = vpop.permute.xlu0 %332
    %334 = vrot.lane.b32.xlu0 %v322, 15
    %v335 = vpop.permute.xlu0 %334
    %336 = vrot.lane.b32.xlu0 %v323, 15
    %v337 = vpop.permute.xlu0 %336
    %338 = vrot.lane.b32.xlu0 %v324, 15
    %v339 = vpop.permute.xlu0 %338
    %vm340 = vcmask 121856
    %v341 = vsel %vm340, %v331, %v333
    %v342 = vsel %vm340, %v333, %v335
    %v343 = vsel %vm340, %v335, %v337
    %v344 = vsel %vm340, %v337, %v339
    %349 = vst [vmem:[#allocation3 + $0x40] sm:$0xff] %v341
    %350 = vst [vmem:[#allocation3 + $0x48] sm:$0xff] %v342
    %351 = vst [vmem:[#allocation3 + $0x50] sm:$0xff] %v343
    %352 = vst [vmem:[#allocation3 + $0x58] sm:$0xff] %v344
    %v353 = vld [vmem:[#allocation2] sm:$0xff]
    %v354 = vld [vmem:[#allocation2 + $0x8] sm:$0xff]
    %v355 = vld [vmem:[#allocation2 + $0x10] sm:$0xff]
    %v356 = vld [vmem:[#allocation2 + $0x18] sm:$0xff]
    %v357 = vld [vmem:[#allocation2 + $0x20] sm:$0xff]
    %v358 = vld [vmem:[#allocation2 + $0x30] sm:$0xff]
    %v359 = vld [vmem:[#allocation2 + $0x38] sm:$0xff]
    %v360 = vld [vmem:[#allocation2 + $0x40] sm:$0xff]
    %v361 = vld [vmem:[#allocation2 + $0x48] sm:$0xff]
    %v362 = vld [vmem:[#allocation2 + $0x50] sm:$0xff]
    %s363 = scalar_lea.vmem [#allocation9], 3
    %v364 = vld [vmem:[%s363] ss:$8 sm:$0xf]
    %v366 = vlaneseq
    %v367 = vshrl.u32 %v366, 7
    %v368 = vsub.s32 0, %v367
    %v369 = vrot.slane %v364, %v368
    %v370 = vlaneseq
    %v371 = vshrl.u32 %v370, 7
    %v372 = vsub.s32 1, %v371
    %v373 = vrot.slane %v364, %v372
    %v374 = vlaneseq
    %v375 = vshrl.u32 %v374, 7
    %v376 = vsub.s32 2, %v375
    %v377 = vrot.slane %v364, %v376
    %v378 = vlaneseq
    %v379 = vshrl.u32 %v378, 7
    %v380 = vsub.s32 3, %v379
    %v381 = vrot.slane %v364, %v380
    %382 = vrot.lane.b32.xlu0 %v369, 127
    %v383 = vpop.permute.xlu0 %382
    %384 = vrot.lane.b32.xlu0 %v373, 127
    %v385 = vpop.permute.xlu0 %384
    %386 = vrot.lane.b32.xlu0 %v377, 127
    %v387 = vpop.permute.xlu0 %386
    %388 = vrot.lane.b32.xlu0 %v381, 127
    %v389 = vpop.permute.xlu0 %388
    %vm390 = vcmask 1039360
    %v391 = vsel %vm390, %v383, %v385
    %v392 = vsel %vm390, %v385, %v387
    %v393 = vsel %vm390, %v387, %v389
    %v399 = vmul.f32 %v353, %v383
    %v400 = vmul.f32 %v354, %v391
    %v401 = vmul.f32 %v355, %v392
    %v402 = vmul.f32 %v356, %v393
    %v403 = vmul.f32 %v357, %v389
    %v404 = vmul.f32 %v358, %v383
    %v405 = vmul.f32 %v359, %v391
    %v406 = vmul.f32 %v360, %v392
    %v407 = vmul.f32 %v361, %v393
    %v408 = vmul.f32 %v362, %v389
    %v409 = vpack.c.bf16 %v404, %v399
    %v410 = vpack.c.bf16 %v405, %v400
    %v411 = vpack.c.bf16 %v406, %v401
    %v412 = vpack.c.bf16 %v407, %v402
    %v413 = vpack.c.bf16 %v408, %v403
    %419 = vrot.lane.b32.xlu0 %v409, 1
    %v420 = vpop.permute.xlu0 %419
    %421 = vrot.lane.b32.xlu0 %v410, 1
    %v422 = vpop.permute.xlu0 %421
    %423 = vrot.lane.b32.xlu0 %v411, 1
    %v424 = vpop.permute.xlu0 %423
    %425 = vrot.lane.b32.xlu0 %v412, 1
    %v426 = vpop.permute.xlu0 %425
    %427 = vrot.lane.b32.xlu0 %v413, 1
    %v428 = vpop.permute.xlu0 %427
    %vm429 = vcmask 7168
    %v430 = vsel %vm429, %v420, %v422
    %v431 = vsel %vm429, %v422, %v424
    %v432 = vsel %vm429, %v424, %v426
    %v433 = vsel %vm429, %v426, %v428
    %438 = vst [vmem:[#allocation3 + $0x60] sm:$0xff] %v430
    %439 = vst [vmem:[#allocation3 + $0x68] sm:$0xff] %v431
    %440 = vst [vmem:[#allocation3 + $0x70] sm:$0xff] %v432
    %441 = vst [vmem:[#allocation3 + $0x78] sm:$0xff] %v433
    %v442 = vld [vmem:[#allocation2 + $0x8] sm:$0xff]
    %v443 = vld [vmem:[#allocation2 + $0x10] sm:$0xff]
    %v444 = vld [vmem:[#allocation2 + $0x18] sm:$0xff]
    %v445 = vld [vmem:[#allocation2 + $0x20] sm:$0xff]
    %v446 = vld [vmem:[#allocation2 + $0x38] sm:$0xff]
    %v447 = vld [vmem:[#allocation2 + $0x40] sm:$0xff]
    %v448 = vld [vmem:[#allocation2 + $0x48] sm:$0xff]
    %v449 = vld [vmem:[#allocation2 + $0x50] sm:$0xff]
    %v450 = vpack.c.bf16 %v446, %v442
    %v451 = vpack.c.bf16 %v447, %v443
    %v452 = vpack.c.bf16 %v448, %v444
    %v453 = vpack.c.bf16 %v449, %v445
    %454 = vst [vmem:[#allocation3 + $0x80] sm:$0xff] %v450
    %455 = vst [vmem:[#allocation3 + $0x88] sm:$0xff] %v451
    %456 = vst [vmem:[#allocation3 + $0x90] sm:$0xff] %v452
    %457 = vst [vmem:[#allocation3 + $0x98] sm:$0xff] %v453
    %v458 = vld [vmem:[#allocation2 + $0x8] sm:$0xff]
    %v459 = vld [vmem:[#allocation2 + $0x10] sm:$0xff]
    %v460 = vld [vmem:[#allocation2 + $0x18] sm:$0xff]
    %v461 = vld [vmem:[#allocation2 + $0x20] sm:$0xff]
    %v462 = vld [vmem:[#allocation2 + $0x28] sm:$0xff]
    %v463 = vld [vmem:[#allocation2 + $0x38] sm:$0xff]
    %v464 = vld [vmem:[#allocation2 + $0x40] sm:$0xff]
    %v465 = vld [vmem:[#allocation2 + $0x48] sm:$0xff]
    %v466 = vld [vmem:[#allocation2 + $0x50] sm:$0xff]
    %v467 = vld [vmem:[#allocation2 + $0x58] sm:$0xff]
    %s468 = scalar_lea.vmem [#allocation9], 5
    %v469 = vld [vmem:[%s468] ss:$8 sm:$0xf]
    %v471 = vlaneseq
    %v472 = vshrl.u32 %v471, 7
    %v473 = vsub.s32 0, %v472
    %v474 = vrot.slane %v469, %v473
    %v475 = vlaneseq
    %v476 = vshrl.u32 %v475, 7
    %v477 = vsub.s32 1, %v476
    %v478 = vrot.slane %v469, %v477
    %v479 = vlaneseq
    %v480 = vshrl.u32 %v479, 7
    %v481 = vsub.s32 2, %v480
    %v482 = vrot.slane %v469, %v481
    %v483 = vlaneseq
    %v484 = vshrl.u32 %v483, 7
    %v485 = vsub.s32 3, %v484
    %v486 = vrot.slane %v469, %v485
    %487 = vrot.lane.b32.xlu0 %v474, 1
    %v488 = vpop.permute.xlu0 %487
    %489 = vrot.lane.b32.xlu0 %v478, 1
    %v490 = vpop.permute.xlu0 %489
    %491 = vrot.lane.b32.xlu0 %v482, 1
    %v492 = vpop.permute.xlu0 %491
    %493 = vrot.lane.b32.xlu0 %v486, 1
    %v494 = vpop.permute.xlu0 %493
    %vm495 = vcmask 7168
    %v496 = vsel %vm495, %v488, %v490
    %v497 = vsel %vm495, %v490, %v492
    %v498 = vsel %vm495, %v492, %v494
    %v504 = vmul.f32 %v458, %v488
    %v505 = vmul.f32 %v459, %v496
    %v506 = vmul.f32 %v460, %v497
    %v507 = vmul.f32 %v461, %v498
    %v508 = vmul.f32 %v462, %v494
    %v509 = vmul.f32 %v463, %v488
    %v510 = vmul.f32 %v464, %v496
    %v511 = vmul.f32 %v465, %v497
    %v512 = vmul.f32 %v466, %v498
    %v513 = vmul.f32 %v467, %v494
    %v514 = vpack.c.bf16 %v509, %v504
    %v515 = vpack.c.bf16 %v510, %v505
    %v516 = vpack.c.bf16 %v511, %v506
    %v517 = vpack.c.bf16 %v512, %v507
    %v518 = vpack.c.bf16 %v513, %v508
    %524 = vrot.lane.b32.xlu0 %v514, 127
    %v525 = vpop.permute.xlu0 %524
    %526 = vrot.lane.b32.xlu0 %v515, 127
    %v527 = vpop.permute.xlu0 %526
    %528 = vrot.lane.b32.xlu0 %v516, 127
    %v529 = vpop.permute.xlu0 %528
    %530 = vrot.lane.b32.xlu0 %v517, 127
    %v531 = vpop.permute.xlu0 %530
    %532 = vrot.lane.b32.xlu0 %v518, 127
    %v533 = vpop.permute.xlu0 %532
    %vm534 = vcmask 1039360
    %v535 = vsel %vm534, %v525, %v527
    %v536 = vsel %vm534, %v527, %v529
    %v537 = vsel %vm534, %v529, %v531
    %v538 = vsel %vm534, %v531, %v533
    %543 = vst [vmem:[#allocation3 + $0xa0] sm:$0xff] %v535
    %544 = vst [vmem:[#allocation3 + $0xa8] sm:$0xff] %v536
    %545 = vst [vmem:[#allocation3 + $0xb0] sm:$0xff] %v537
    %546 = vst [vmem:[#allocation3 + $0xb8] sm:$0xff] %v538
    %v547 = vld [vmem:[#allocation2 + $0x8] sm:$0xff]
    %v548 = vld [vmem:[#allocation2 + $0x10] sm:$0xff]
    %v549 = vld [vmem:[#allocation2 + $0x18] sm:$0xff]
    %v550 = vld [vmem:[#allocation2 + $0x20] sm:$0xff]
    %v551 = vld [vmem:[#allocation2 + $0x28] sm:$0xff]
    %v552 = vld [vmem:[#allocation2 + $0x38] sm:$0xff]
    %v553 = vld [vmem:[#allocation2 + $0x40] sm:$0xff]
    %v554 = vld [vmem:[#allocation2 + $0x48] sm:$0xff]
    %v555 = vld [vmem:[#allocation2 + $0x50] sm:$0xff]
    %v556 = vld [vmem:[#allocation2 + $0x58] sm:$0xff]
    %s557 = scalar_lea.vmem [#allocation9], 6
    %v558 = vld [vmem:[%s557] ss:$8 sm:$0xf]
    %v560 = vlaneseq
    %v561 = vshrl.u32 %v560, 7
    %v562 = vsub.s32 0, %v561
    %v563 = vrot.slane %v558, %v562
    %v564 = vlaneseq
    %v565 = vshrl.u32 %v564, 7
    %v566 = vsub.s32 1, %v565
    %v567 = vrot.slane %v558, %v566
    %v568 = vlaneseq
    %v569 = vshrl.u32 %v568, 7
    %v570 = vsub.s32 2, %v569
    %v571 = vrot.slane %v558, %v570
    %v572 = vlaneseq
    %v573 = vshrl.u32 %v572, 7
    %v574 = vsub.s32 3, %v573
    %v575 = vrot.slane %v558, %v574
    %576 = vrot.lane.b32.xlu0 %v563, 15
    %v577 = vpop.permute.xlu0 %576
    %578 = vrot.lane.b32.xlu0 %v567, 15
    %v579 = vpop.permute.xlu0 %578
    %580 = vrot.lane.b32.xlu0 %v571, 15
    %v581 = vpop.permute.xlu0 %580
    %582 = vrot.lane.b32.xlu0 %v575, 15
    %v583 = vpop.permute.xlu0 %582
    %vm584 = vcmask 121856
    %v585 = vsel %vm584, %v577, %v579
    %v586 = vsel %vm584, %v579, %v581
    %v587 = vsel %vm584, %v581, %v583
    %v593 = vmul.f32 %v547, %v577
    %v594 = vmul.f32 %v548, %v585
    %v595 = vmul.f32 %v549, %v586
    %v596 = vmul.f32 %v550, %v587
    %v597 = vmul.f32 %v551, %v583
    %v598 = vmul.f32 %v552, %v577
    %v599 = vmul.f32 %v553, %v585
    %v600 = vmul.f32 %v554, %v586
    %v601 = vmul.f32 %v555, %v587
    %v602 = vmul.f32 %v556, %v583
    %v603 = vpack.c.bf16 %v598, %v593
    %v604 = vpack.c.bf16 %v599, %v594
    %v605 = vpack.c.bf16 %v600, %v595
    %v606 = vpack.c.bf16 %v601, %v596
    %v607 = vpack.c.bf16 %v602, %v597
    %613 = vrot.lane.b32.xlu0 %v603, 113
    %v614 = vpop.permute.xlu0 %613
    %615 = vrot.lane.b32.xlu0 %v604, 113
    %v616 = vpop.permute.xlu0 %615
    %617 = vrot.lane.b32.xlu0 %v605, 113
    %v618 = vpop.permute.xlu0 %617
    %619 = vrot.lane.b32.xlu0 %v606, 113
    %v620 = vpop.permute.xlu0 %619
    %621 = vrot.lane.b32.xlu0 %v607, 113
    %v622 = vpop.permute.xlu0 %621
    %vm623 = vcmask 924672
    %v624 = vsel %vm623, %v614, %v616
    %v625 = vsel %vm623, %v616, %v618
    %v626 = vsel %vm623, %v618, %v620
    %v627 = vsel %vm623, %v620, %v622
    %632 = vst [vmem:[#allocation3 + $0xc0] sm:$0xff] %v624
    %633 = vst [vmem:[#allocation3 + $0xc8] sm:$0xff] %v625
    %634 = vst [vmem:[#allocation3 + $0xd0] sm:$0xff] %v626
    %635 = vst [vmem:[#allocation3 + $0xd8] sm:$0xff] %v627
    %v636 = vld [vmem:[#allocation2 + $0x8] sm:$0xff]
    %v637 = vld [vmem:[#allocation2 + $0x10] sm:$0xff]
    %v638 = vld [vmem:[#allocation2 + $0x18] sm:$0xff]
    %v639 = vld [vmem:[#allocation2 + $0x20] sm:$0xff]
    %v640 = vld [vmem:[#allocation2 + $0x28] sm:$0xff]
    %v641 = vld [vmem:[#allocation2 + $0x38] sm:$0xff]
    %v642 = vld [vmem:[#allocation2 + $0x40] sm:$0xff]
    %v643 = vld [vmem:[#allocation2 + $0x48] sm:$0xff]
    %v644 = vld [vmem:[#allocation2 + $0x50] sm:$0xff]
    %v645 = vld [vmem:[#allocation2 + $0x58] sm:$0xff]
    %s646 = scalar_lea.vmem [#allocation9], 7
    %v647 = vld [vmem:[%s646] ss:$8 sm:$0xf]
    %v649 = vlaneseq
    %v650 = vshrl.u32 %v649, 7
    %v651 = vsub.s32 0, %v650
    %v652 = vrot.slane %v647, %v651
    %v653 = vlaneseq
    %v654 = vshrl.u32 %v653, 7
    %v655 = vsub.s32 1, %v654
    %v656 = vrot.slane %v647, %v655
    %v657 = vlaneseq
    %v658 = vshrl.u32 %v657, 7
    %v659 = vsub.s32 2, %v658
    %v660 = vrot.slane %v647, %v659
    %v661 = vlaneseq
    %v662 = vshrl.u32 %v661, 7
    %v663 = vsub.s32 3, %v662
    %v664 = vrot.slane %v647, %v663
    %665 = vrot.lane.b32.xlu0 %v652, 16
    %v666 = vpop.permute.xlu0 %665
    %667 = vrot.lane.b32.xlu0 %v656, 16
    %v668 = vpop.permute.xlu0 %667
    %669 = vrot.lane.b32.xlu0 %v660, 16
    %v670 = vpop.permute.xlu0 %669
    %671 = vrot.lane.b32.xlu0 %v664, 16
    %v672 = vpop.permute.xlu0 %671
    %vm673 = vcmask 130048
    %v674 = vsel %vm673, %v666, %v668
    %v675 = vsel %vm673, %v668, %v670
    %v676 = vsel %vm673, %v670, %v672
    %v682 = vmul.f32 %v636, %v666
    %v683 = vmul.f32 %v637, %v674
    %v684 = vmul.f32 %v638, %v675
    %v685 = vmul.f32 %v639, %v676
    %v686 = vmul.f32 %v640, %v672
    %v687 = vmul.f32 %v641, %v666
    %v688 = vmul.f32 %v642, %v674
    %v689 = vmul.f32 %v643, %v675
    %v690 = vmul.f32 %v644, %v676
    %v691 = vmul.f32 %v645, %v672
    %v692 = vpack.c.bf16 %v687, %v682
    %v693 = vpack.c.bf16 %v688, %v683
    %v694 = vpack.c.bf16 %v689, %v684
    %v695 = vpack.c.bf16 %v690, %v685
    %v696 = vpack.c.bf16 %v691, %v686
    %702 = vrot.lane.b32.xlu0 %v692, 112
    %v703 = vpop.permute.xlu0 %702
    %704 = vrot.lane.b32.xlu0 %v693, 112
    %v705 = vpop.permute.xlu0 %704
    %706 = vrot.lane.b32.xlu0 %v694, 112
    %v707 = vpop.permute.xlu0 %706
    %708 = vrot.lane.b32.xlu0 %v695, 112
    %v709 = vpop.permute.xlu0 %708
    %710 = vrot.lane.b32.xlu0 %v696, 112
    %v711 = vpop.permute.xlu0 %710
    %vm712 = vcmask 916480
    %v713 = vsel %vm712, %v703, %v705
    %v714 = vsel %vm712, %v705, %v707
    %v715 = vsel %vm712, %v707, %v709
    %v716 = vsel %vm712, %v709, %v711
    %721 = vst [vmem:[#allocation3 + $0xe0] sm:$0xff] %v713
    %722 = vst [vmem:[#allocation3 + $0xe8] sm:$0xff] %v714
    %723 = vst [vmem:[#allocation3 + $0xf0] sm:$0xff] %v715
    %724 = vst [vmem:[#allocation3 + $0xf8] sm:$0xff] %v716
    %v725 = vld [vmem:[#allocation2 + $0x8] sm:$0xff]
    %v726 = vld [vmem:[#allocation2 + $0x10] sm:$0xff]
    %v727 = vld [vmem:[#allocation2 + $0x18] sm:$0xff]
    %v728 = vld [vmem:[#allocation2 + $0x20] sm:$0xff]
    %v729 = vld [vmem:[#allocation2 + $0x28] sm:$0xff]
    %v730 = vld [vmem:[#allocation2 + $0x38] sm:$0xff]
    %v731 = vld [vmem:[#allocation2 + $0x40] sm:$0xff]
    %v732 = vld [vmem:[#allocation2 + $0x48] sm:$0xff]
    %v733 = vld [vmem:[#allocation2 + $0x50] sm:$0xff]
    %v734 = vld [vmem:[#allocation2 + $0x58] sm:$0xff]
    %s735 = scalar_lea.vmem [#allocation9], 32
    %v736 = vld [vmem:[%s735] ss:$8 sm:$0xf]
    %v738 = vlaneseq
    %v739 = vshrl.u32 %v738, 7
    %v740 = vsub.s32 0, %v739
    %v741 = vrot.slane %v736, %v740
    %v742 = vlaneseq
    %v743 = vshrl.u32 %v742, 7
    %v744 = vsub.s32 1, %v743
    %v745 = vrot.slane %v736, %v744
    %v746 = vlaneseq
    %v747 = vshrl.u32 %v746, 7
    %v748 = vsub.s32 2, %v747
    %v749 = vrot.slane %v736, %v748
    %v750 = vlaneseq
    %v751 = vshrl.u32 %v750, 7
    %v752 = vsub.s32 3, %v751
    %v753 = vrot.slane %v736, %v752
    %754 = vrot.lane.b32.xlu0 %v741, 17
    %v755 = vpop.permute.xlu0 %754
    %756 = vrot.lane.b32.xlu0 %v745, 17
    %v757 = vpop.permute.xlu0 %756
    %758 = vrot.lane.b32.xlu0 %v749, 17
    %v759 = vpop.permute.xlu0 %758
    %760 = vrot.lane.b32.xlu0 %v753, 17
    %v761 = vpop.permute.xlu0 %760
    %vm762 = vcmask 138240
    %v763 = vsel %vm762, %v755, %v757
    %v764 = vsel %vm762, %v757, %v759
    %v765 = vsel %vm762, %v759, %v761
    %v771 = vmul.f32 %v725, %v755
    %v772 = vmul.f32 %v726, %v763
    %v773 = vmul.f32 %v727, %v764
    %v774 = vmul.f32 %v728, %v765
    %v775 = vmul.f32 %v729, %v761
    %v776 = vmul.f32 %v730, %v755
    %v777 = vmul.f32 %v731, %v763
    %v778 = vmul.f32 %v732, %v764
    %v779 = vmul.f32 %v733, %v765
    %v780 = vmul.f32 %v734, %v761
    %v781 = vpack.c.bf16 %v776, %v771
    %v782 = vpack.c.bf16 %v777, %v772
    %v783 = vpack.c.bf16 %v778, %v773
    %v784 = vpack.c.bf16 %v779, %v774
    %v785 = vpack.c.bf16 %v780, %v775
    %791 = vrot.lane.b32.xlu0 %v781, 111
    %v792 = vpop.permute.xlu0 %791
    %793 = vrot.lane.b32.xlu0 %v782, 111
    %v794 = vpop.permute.xlu0 %793
    %795 = vrot.lane.b32.xlu0 %v783, 111
    %v796 = vpop.permute.xlu0 %795
    %797 = vrot.lane.b32.xlu0 %v784, 111
    %v798 = vpop.permute.xlu0 %797
    %799 = vrot.lane.b32.xlu0 %v785, 111
    %v800 = vpop.permute.xlu0 %799
    %vm801 = vcmask 908288
    %v802 = vsel %vm801, %v792, %v794
    %v803 = vsel %vm801, %v794, %v796
    %v804 = vsel %vm801, %v796, %v798
    %v805 = vsel %vm801, %v798, %v800
    %810 = vst [vmem:[#allocation3 + $0x100] sm:$0xff] %v802
    %811 = vst [vmem:[#allocation3 + $0x108] sm:$0xff] %v803
    %812 = vst [vmem:[#allocation3 + $0x110] sm:$0xff] %v804
    %813 = vst [vmem:[#allocation3 + $0x118] sm:$0xff] %v805
    %v814 = vld [vmem:[%s1] sm:$0xff]
    %v815 = vld [vmem:[#allocation3] sm:$0xff]
    %v816 = vld [vmem:[#allocation3 + $0x8] sm:$0xff]
    %v817 = vld [vmem:[#allocation3 + $0x10] sm:$0xff]
    %v818 = vld [vmem:[#allocation3 + $0x18] sm:$0xff]
    %v819 = vld [vmem:[#allocation3 + $0x20] sm:$0xff]
    %v820 = vld [vmem:[#allocation3 + $0x28] sm:$0xff]
    %v821 = vld [vmem:[#allocation3 + $0x30] sm:$0xff]
    %v822 = vld [vmem:[#allocation3 + $0x38] sm:$0xff]
    %v823 = vld [vmem:[#allocation3 + $0x40] sm:$0xff]
    %v824 = vld [vmem:[#allocation3 + $0x48] sm:$0xff]
    %v825 = vld [vmem:[#allocation3 + $0x50] sm:$0xff]
    %v826 = vld [vmem:[#allocation3 + $0x58] sm:$0xff]
    %v827 = vld [vmem:[#allocation3 + $0x60] sm:$0xff]
    %v828 = vld [vmem:[#allocation3 + $0x68] sm:$0xff]
    %v829 = vld [vmem:[#allocation3 + $0x70] sm:$0xff]
    %v830 = vld [vmem:[#allocation3 + $0x78] sm:$0xff]
    %v831 = vld [vmem:[#allocation3 + $0x80] sm:$0xff]
    %v832 = vld [vmem:[#allocation3 + $0x88] sm:$0xff]
    %v833 = vld [vmem:[#allocation3 + $0x90] sm:$0xff]
    %v834 = vld [vmem:[#allocation3 + $0x98] sm:$0xff]
    %v835 = vld [vmem:[#allocation3 + $0xa0] sm:$0xff]
    %v836 = vld [vmem:[#allocation3 + $0xa8] sm:$0xff]
    %v837 = vld [vmem:[#allocation3 + $0xb0] sm:$0xff]
    %v838 = vld [vmem:[#allocation3 + $0xb8] sm:$0xff]
    %v839 = vld [vmem:[#allocation3 + $0xc0] sm:$0xff]
    %v840 = vld [vmem:[#allocation3 + $0xc8] sm:$0xff]
    %v841 = vld [vmem:[#allocation3 + $0xd0] sm:$0xff]
    %v842 = vld [vmem:[#allocation3 + $0xd8] sm:$0xff]
    %v843 = vld [vmem:[#allocation3 + $0xe0] sm:$0xff]
    %v844 = vld [vmem:[#allocation3 + $0xe8] sm:$0xff]
    %v845 = vld [vmem:[#allocation3 + $0xf0] sm:$0xff]
    %v846 = vld [vmem:[#allocation3 + $0xf8] sm:$0xff]
    %v847 = vld [vmem:[#allocation3 + $0x100] sm:$0xff]
    %v848 = vld [vmem:[#allocation3 + $0x108] sm:$0xff]
    %v849 = vld [vmem:[#allocation3 + $0x110] sm:$0xff]
    %v850 = vld [vmem:[#allocation3 + $0x118] sm:$0xff]
    %v851 = vld [vmem:[%s2] sm:$0xff]
    %853 = vset.pattern.permute.xlu0 0
    %854 = vperm.xlu0 %853, %v851
    %v855 = vpop.permute.xlu0 %854
    %v858 = vunpack.c.l.b16 %v814
    %v859 = vunpack.c.h.b16 %v814
    %v860 = vpack.c.b16 %v858, %v858
    %v861 = vpack.c.b16 %v859, %v859
    %v864 = vsel %vm673, %v861, 0
    %866 = vmatprep.subr.bf16.mxu0 %v816
    %867 = vmatpush1.bf16.msra.mxu0 %v815
    %868 = vmatprep.subr.bf16.mxu0 %v820
    %869 = vmatpush1.bf16.msra.mxu0 %v819
    %870 = vmatprep.subr.bf16.mxu0 %v824
    %871 = vmatpush1.bf16.msra.mxu0 %v823
    %872 = vmatprep.subr.bf16.mxu0 %v828
    %873 = vmatpush1.bf16.msra.mxu0 %v827
    %874 = vmatprep.subr.bf16.mxu0 %v832
    %875 = vmatpush1.bf16.msra.mxu0 %v831
    %876 = vmatprep.subr.bf16.mxu0 %v836
    %877 = vmatpush1.bf16.msra.mxu0 %v835
    %878 = vmatprep.subr.bf16.mxu0 %v840
    %879 = vmatpush1.bf16.msra.mxu0 %v839
    %880 = vmatprep.subr.bf16.mxu0 %v844
    %881 = vmatpush1.bf16.msra.mxu0 %v843
    %882 = vmatprep.subr.bf16.mxu0 %v848
    %883 = vmatpush1.bf16.msra.mxu0 %v847
    %884 = vmatprep.subr.bf16.mxu0 0
    %885 = vmatpush1.bf16.msra.mxu0 0
    %886 = vmatprep.subr.bf16.mxu0 0
    %887 = vmatpush1.bf16.msra.mxu0 0
    %888 = vmatprep.subr.bf16.mxu0 0
    %889 = vmatpush1.bf16.msra.mxu0 0
    %890 = vmatprep.subr.bf16.mxu0 0
    %891 = vmatpush1.bf16.msra.mxu0 0
    %892 = vmatprep.subr.bf16.mxu0 0
    %893 = vmatpush1.bf16.msra.mxu0 0
    %894 = vmatprep.subr.bf16.mxu0 0
    %895 = vmatpush1.bf16.msra.mxu0 0
    %896 = vmatprep.subr.bf16.mxu0 0
    %897 = vmatpush1.bf16.msra.mxu0 0
    %898 = vmatprep.mubr.bf16.mxu0 %v864
    %899 = vmatmul.mubr.bf16.gmra.mrb[0].mxu0 %v860
    %v900 = vpop.f32.mrb[0].mxu0
    %v901 = vadd.f32 %v855, %v900
    %v902 = vpop.f32.mrb[0].mxu0
    %v903 = vadd.f32 %v855, %v902
    %v904 = vpop.f32.mrb[0].mxu0
    %v905 = vpop.f32.mrb[0].mxu0
    %906 = vdwg.mxu0
    %907 = vmatprep.subr.bf16.mxu0 %v818
    %908 = vmatpush1.bf16.msra.mxu0 %v817
    %909 = vmatprep.subr.bf16.mxu0 %v822
    %910 = vmatpush1.bf16.msra.mxu0 %v821
    %911 = vmatprep.subr.bf16.mxu0 %v826
    %912 = vmatpush1.bf16.msra.mxu0 %v825
    %913 = vmatprep.subr.bf16.mxu0 %v830
    %914 = vmatpush1.bf16.msra.mxu0 %v829
    %915 = vmatprep.subr.bf16.mxu0 %v834
    %916 = vmatpush1.bf16.msra.mxu0 %v833
    %917 = vmatprep.subr.bf16.mxu0 %v838
    %918 = vmatpush1.bf16.msra.mxu0 %v837
    %919 = vmatprep.subr.bf16.mxu0 %v842
    %920 = vmatpush1.bf16.msra.mxu0 %v841
    %921 = vmatprep.subr.bf16.mxu0 %v846
    %922 = vmatpush1.bf16.msra.mxu0 %v845
    %923 = vmatprep.subr.bf16.mxu0 %v850
    %924 = vmatpush1.bf16.msra.mxu0 %v849
    %925 = vmatprep.subr.bf16.mxu0 0
    %926 = vmatpush1.bf16.msra.mxu0 0
    %927 = vmatprep.subr.bf16.mxu0 0
    %928 = vmatpush1.bf16.msra.mxu0 0
    %929 = vmatprep.subr.bf16.mxu0 0
    %930 = vmatpush1.bf16.msra.mxu0 0
    %931 = vmatprep.subr.bf16.mxu0 0
    %932 = vmatpush1.bf16.msra.mxu0 0
    %933 = vmatprep.subr.bf16.mxu0 0
    %934 = vmatpush1.bf16.msra.mxu0 0
    %935 = vmatprep.subr.bf16.mxu0 0
    %936 = vmatpush1.bf16.msra.mxu0 0
    %937 = vmatprep.subr.bf16.mxu0 0
    %938 = vmatpush1.bf16.msra.mxu0 0
    %939 = vmatprep.mubr.bf16.mxu0 %v864
    %940 = vmatmul.mubr.bf16.gmra.mrb[0].mxu0 %v860
    %v941 = vpop.f32.mrb[0].mxu0
    %v942 = vadd.f32 %v855, %v941
    %v943 = vpop.f32.mrb[0].mxu0
    %v944 = vadd.f32 %v855, %v943
    %v945 = vpop.f32.mrb[0].mxu0
    %v946 = vpop.f32.mrb[0].mxu0
    %947 = vdwg.mxu0
    %v948 = vmax.f32 %v901, 0.0
    %v949 = vmax.f32 %v903, 0.0
    %v950 = vmax.f32 %v942, 0.0
    %v951 = vmax.f32 %v944, 0.0
    %952 = vst [vmem:[#allocation4 + $0x8] sm:$0xff] %v948
    %953 = vst [vmem:[#allocation4 + $0x10] sm:$0xff] %v949
    %954 = vst [vmem:[#allocation4 + $0x18] sm:$0xff] %v950
    %955 = vst [vmem:[#allocation4 + $0x20] sm:$0xff] %v951
    %v956 = vld [vmem:[#allocation4] sm:$0xff]
    %v957 = vld [vmem:[#allocation4 + $0x8] sm:$0xff]
    %v958 = vld [vmem:[#allocation4 + $0x10] sm:$0xff]
    %v959 = vld [vmem:[#allocation4 + $0x18] sm:$0xff]
    %v960 = vld [vmem:[#allocation4 + $0x20] sm:$0xff]
    %v961 = vld [vmem:[#allocation4 + $0x30] sm:$0xff]
    %v962 = vld [vmem:[#allocation4 + $0x38] sm:$0xff]
    %v963 = vld [vmem:[#allocation4 + $0x40] sm:$0xff]
    %v964 = vld [vmem:[#allocation4 + $0x48] sm:$0xff]
    %v965 = vld [vmem:[#allocation4 + $0x50] sm:$0xff]
    %v966 = vld [vmem:[#allocation9] ss:$8 sm:$0xf]
    %v968 = vlaneseq
    %v969 = vshrl.u32 %v968, 7
    %v970 = vsub.s32 0, %v969
    %v971 = vrot.slane %v966, %v970
    %v972 = vlaneseq
    %v973 = vshrl.u32 %v972, 7
    %v974 = vsub.s32 1, %v973
    %v975 = vrot.slane %v966, %v974
    %v976 = vlaneseq
    %v977 = vshrl.u32 %v976, 7
    %v978 = vsub.s32 2, %v977
    %v979 = vrot.slane %v966, %v978
    %v980 = vlaneseq
    %v981 = vshrl.u32 %v980, 7
    %v982 = vsub.s32 3, %v981
    %v983 = vrot.slane %v966, %v982
    %984 = vrot.lane.b32.xlu0 %v971, 111
    %v985 = vpop.permute.xlu0 %984
    %986 = vrot.lane.b32.xlu0 %v975, 111
    %v987 = vpop.permute.xlu0 %986
    %988 = vrot.lane.b32.xlu0 %v979, 111
    %v989 = vpop.permute.xlu0 %988
    %990 = vrot.lane.b32.xlu0 %v983, 111
    %v991 = vpop.permute.xlu0 %990
    %v992 = vsel %vm123, %v985, %v987
    %v993 = vsel %vm123, %v987, %v989
    %v994 = vsel %vm123, %v989, %v991
    %v1000 = vmul.f32 %v956, %v985
    %v1001 = vmul.f32 %v957, %v992
    %v1002 = vmul.f32 %v958, %v993
    %v1003 = vmul.f32 %v959, %v994
    %v1004 = vmul.f32 %v960, %v991
    %v1005 = vmul.f32 %v961, %v985
    %v1006 = vmul.f32 %v962, %v992
    %v1007 = vmul.f32 %v963, %v993
    %v1008 = vmul.f32 %v964, %v994
    %v1009 = vmul.f32 %v965, %v991
    %v1010 = vpack.c.bf16 %v1005, %v1000
    %v1011 = vpack.c.bf16 %v1006, %v1001
    %v1012 = vpack.c.bf16 %v1007, %v1002
    %v1013 = vpack.c.bf16 %v1008, %v1003
    %v1014 = vpack.c.bf16 %v1009, %v1004
    %1020 = vrot.lane.b32.xlu0 %v1010, 17
    %v1021 = vpop.permute.xlu0 %1020
    %1022 = vrot.lane.b32.xlu0 %v1011, 17
    %v1023 = vpop.permute.xlu0 %1022
    %1024 = vrot.lane.b32.xlu0 %v1012, 17
    %v1025 = vpop.permute.xlu0 %1024
    %1026 = vrot.lane.b32.xlu0 %v1013, 17
    %v1027 = vpop.permute.xlu0 %1026
    %1028 = vrot.lane.b32.xlu0 %v1014, 17
    %v1029 = vpop.permute.xlu0 %1028
    %v1030 = vsel %vm162, %v1021, %v1023
    %v1031 = vsel %vm162, %v1023, %v1025
    %v1032 = vsel %vm162, %v1025, %v1027
    %v1033 = vsel %vm162, %v1027, %v1029
    %1038 = vst [vmem:[#allocation5] sm:$0xff] %v1030
    %1039 = vst [vmem:[#allocation5 + $0x8] sm:$0xff] %v1031
    %1040 = vst [vmem:[#allocation5 + $0x10] sm:$0xff] %v1032
    %1041 = vst [vmem:[#allocation5 + $0x18] sm:$0xff] %v1033
    %v1042 = vld [vmem:[#allocation4] sm:$0xff]
    %v1043 = vld [vmem:[#allocation4 + $0x8] sm:$0xff]
    %v1044 = vld [vmem:[#allocation4 + $0x10] sm:$0xff]
    %v1045 = vld [vmem:[#allocation4 + $0x18] sm:$0xff]
    %v1046 = vld [vmem:[#allocation4 + $0x20] sm:$0xff]
    %v1047 = vld [vmem:[#allocation4 + $0x30] sm:$0xff]
    %v1048 = vld [vmem:[#allocation4 + $0x38] sm:$0xff]
    %v1049 = vld [vmem:[#allocation4 + $0x40] sm:$0xff]
    %v1050 = vld [vmem:[#allocation4 + $0x48] sm:$0xff]
    %v1051 = vld [vmem:[#allocation4 + $0x50] sm:$0xff]
    %v1052 = vld [vmem:[%s185] ss:$8 sm:$0xf]
    %v1054 = vlaneseq
    %v1055 = vshrl.u32 %v1054, 7
    %v1056 = vsub.s32 0, %v1055
    %v1057 = vrot.slane %v1052, %v1056
    %v1058 = vlaneseq
    %v1059 = vshrl.u32 %v1058, 7
    %v1060 = vsub.s32 1, %v1059
    %v1061 = vrot.slane %v1052, %v1060
    %v1062 = vlaneseq
    %v1063 = vshrl.u32 %v1062, 7
    %v1064 = vsub.s32 2, %v1063
    %v1065 = vrot.slane %v1052, %v1064
    %v1066 = vlaneseq
    %v1067 = vshrl.u32 %v1066, 7
    %v1068 = vsub.s32 3, %v1067
    %v1069 = vrot.slane %v1052, %v1068
    %1070 = vrot.lane.b32.xlu0 %v1057, 112
    %v1071 = vpop.permute.xlu0 %1070
    %1072 = vrot.lane.b32.xlu0 %v1061, 112
    %v1073 = vpop.permute.xlu0 %1072
    %1074 = vrot.lane.b32.xlu0 %v1065, 112
    %v1075 = vpop.permute.xlu0 %1074
    %1076 = vrot.lane.b32.xlu0 %v1069, 112
    %v1077 = vpop.permute.xlu0 %1076
    %v1078 = vsel %vm212, %v1071, %v1073
    %v1079 = vsel %vm212, %v1073, %v1075
    %v1080 = vsel %vm212, %v1075, %v1077
    %v1086 = vmul.f32 %v1042, %v1071
    %v1087 = vmul.f32 %v1043, %v1078
    %v1088 = vmul.f32 %v1044, %v1079
    %v1089 = vmul.f32 %v1045, %v1080
    %v1090 = vmul.f32 %v1046, %v1077
    %v1091 = vmul.f32 %v1047, %v1071
    %v1092 = vmul.f32 %v1048, %v1078
    %v1093 = vmul.f32 %v1049, %v1079
    %v1094 = vmul.f32 %v1050, %v1080
    %v1095 = vmul.f32 %v1051, %v1077
    %v1096 = vpack.c.bf16 %v1091, %v1086
    %v1097 = vpack.c.bf16 %v1092, %v1087
    %v1098 = vpack.c.bf16 %v1093, %v1088
    %v1099 = vpack.c.bf16 %v1094, %v1089
    %v1100 = vpack.c.bf16 %v1095, %v1090
    %1106 = vrot.lane.b32.xlu0 %v1096, 16
    %v1107 = vpop.permute.xlu0 %1106
    %1108 = vrot.lane.b32.xlu0 %v1097, 16
    %v1109 = vpop.permute.xlu0 %1108
    %1110 = vrot.lane.b32.xlu0 %v1098, 16
    %v1111 = vpop.permute.xlu0 %1110
    %1112 = vrot.lane.b32.xlu0 %v1099, 16
    %v1113 = vpop.permute.xlu0 %1112
    %1114 = vrot.lane.b32.xlu0 %v1100, 16
    %v1115 = vpop.permute.xlu0 %1114
    %v1116 = vsel %vm251, %v1107, %v1109
    %v1117 = vsel %vm251, %v1109, %v1111
    %v1118 = vsel %vm251, %v1111, %v1113
    %v1119 = vsel %vm251, %v1113, %v1115
    %1124 = vst [vmem:[#allocation5 + $0x20] sm:$0xff] %v1116
    %1125 = vst [vmem:[#allocation5 + $0x28] sm:$0xff] %v1117
    %1126 = vst [vmem:[#allocation5 + $0x30] sm:$0xff] %v1118
    %1127 = vst [vmem:[#allocation5 + $0x38] sm:$0xff] %v1119
    %v1128 = vld [vmem:[#allocation4] sm:$0xff]
    %v1129 = vld [vmem:[#allocation4 + $0x8] sm:$0xff]
    %v1130 = vld [vmem:[#allocation4 + $0x10] sm:$0xff]
    %v1131 = vld [vmem:[#allocation4 + $0x18] sm:$0xff]
    %v1132 = vld [vmem:[#allocation4 + $0x20] sm:$0xff]
    %v1133 = vld [vmem:[#allocation4 + $0x30] sm:$0xff]
    %v1134 = vld [vmem:[#allocation4 + $0x38] sm:$0xff]
    %v1135 = vld [vmem:[#allocation4 + $0x40] sm:$0xff]
    %v1136 = vld [vmem:[#allocation4 + $0x48] sm:$0xff]
    %v1137 = vld [vmem:[#allocation4 + $0x50] sm:$0xff]
    %v1138 = vld [vmem:[%s274] ss:$8 sm:$0xf]
    %v1140 = vlaneseq
    %v1141 = vshrl.u32 %v1140, 7
    %v1142 = vsub.s32 0, %v1141
    %v1143 = vrot.slane %v1138, %v1142
    %v1144 = vlaneseq
    %v1145 = vshrl.u32 %v1144, 7
    %v1146 = vsub.s32 1, %v1145
    %v1147 = vrot.slane %v1138, %v1146
    %v1148 = vlaneseq
    %v1149 = vshrl.u32 %v1148, 7
    %v1150 = vsub.s32 2, %v1149
    %v1151 = vrot.slane %v1138, %v1150
    %v1152 = vlaneseq
    %v1153 = vshrl.u32 %v1152, 7
    %v1154 = vsub.s32 3, %v1153
    %v1155 = vrot.slane %v1138, %v1154
    %1156 = vrot.lane.b32.xlu0 %v1143, 113
    %v1157 = vpop.permute.xlu0 %1156
    %1158 = vrot.lane.b32.xlu0 %v1147, 113
    %v1159 = vpop.permute.xlu0 %1158
    %1160 = vrot.lane.b32.xlu0 %v1151, 113
    %v1161 = vpop.permute.xlu0 %1160
    %1162 = vrot.lane.b32.xlu0 %v1155, 113
    %v1163 = vpop.permute.xlu0 %1162
    %v1164 = vsel %vm301, %v1157, %v1159
    %v1165 = vsel %vm301, %v1159, %v1161
    %v1166 = vsel %vm301, %v1161, %v1163
    %v1172 = vmul.f32 %v1128, %v1157
    %v1173 = vmul.f32 %v1129, %v1164
    %v1174 = vmul.f32 %v1130, %v1165
    %v1175 = vmul.f32 %v1131, %v1166
    %v1176 = vmul.f32 %v1132, %v1163
    %v1177 = vmul.f32 %v1133, %v1157
    %v1178 = vmul.f32 %v1134, %v1164
    %v1179 = vmul.f32 %v1135, %v1165
    %v1180 = vmul.f32 %v1136, %v1166
    %v1181 = vmul.f32 %v1137, %v1163
    %v1182 = vpack.c.bf16 %v1177, %v1172
    %v1183 = vpack.c.bf16 %v1178, %v1173
    %v1184 = vpack.c.bf16 %v1179, %v1174
    %v1185 = vpack.c.bf16 %v1180, %v1175
    %v1186 = vpack.c.bf16 %v1181, %v1176
    %1192 = vrot.lane.b32.xlu0 %v1182, 15
    %v1193 = vpop.permute.xlu0 %1192
    %1194 = vrot.lane.b32.xlu0 %v1183, 15
    %v1195 = vpop.permute.xlu0 %1194
    %1196 = vrot.lane.b32.xlu0 %v1184, 15
    %v1197 = vpop.permute.xlu0 %1196
    %1198 = vrot.lane.b32.xlu0 %v1185, 15
    %v1199 = vpop.permute.xlu0 %1198
    %1200 = vrot.lane.b32.xlu0 %v1186, 15
    %v1201 = vpop.permute.xlu0 %1200
    %v1202 = vsel %vm340, %v1193, %v1195
    %v1203 = vsel %vm340, %v1195, %v1197
    %v1204 = vsel %vm340, %v1197, %v1199
    %v1205 = vsel %vm340, %v1199, %v1201
    %1210 = vst [vmem:[#allocation5 + $0x40] sm:$0xff] %v1202
    %1211 = vst [vmem:[#allocation5 + $0x48] sm:$0xff] %v1203
    %1212 = vst [vmem:[#allocation5 + $0x50] sm:$0xff] %v1204
    %1213 = vst [vmem:[#allocation5 + $0x58] sm:$0xff] %v1205
    %v1214 = vld [vmem:[#allocation4] sm:$0xff]
    %v1215 = vld [vmem:[#allocation4 + $0x8] sm:$0xff]
    %v1216 = vld [vmem:[#allocation4 + $0x10] sm:$0xff]
    %v1217 = vld [vmem:[#allocation4 + $0x18] sm:$0xff]
    %v1218 = vld [vmem:[#allocation4 + $0x20] sm:$0xff]
    %v1219 = vld [vmem:[#allocation4 + $0x30] sm:$0xff]
    %v1220 = vld [vmem:[#allocation4 + $0x38] sm:$0xff]
    %v1221 = vld [vmem:[#allocation4 + $0x40] sm:$0xff]
    %v1222 = vld [vmem:[#allocation4 + $0x48] sm:$0xff]
    %v1223 = vld [vmem:[#allocation4 + $0x50] sm:$0xff]
    %v1224 = vld [vmem:[%s363] ss:$8 sm:$0xf]
    %v1226 = vlaneseq
    %v1227 = vshrl.u32 %v1226, 7
    %v1228 = vsub.s32 0, %v1227
    %v1229 = vrot.slane %v1224, %v1228
    %v1230 = vlaneseq
    %v1231 = vshrl.u32 %v1230, 7
    %v1232 = vsub.s32 1, %v1231
    %v1233 = vrot.slane %v1224, %v1232
    %v1234 = vlaneseq
    %v1235 = vshrl.u32 %v1234, 7
    %v1236 = vsub.s32 2, %v1235
    %v1237 = vrot.slane %v1224, %v1236
    %v1238 = vlaneseq
    %v1239 = vshrl.u32 %v1238, 7
    %v1240 = vsub.s32 3, %v1239
    %v1241 = vrot.slane %v1224, %v1240
    %1242 = vrot.lane.b32.xlu0 %v1229, 127
    %v1243 = vpop.permute.xlu0 %1242
    %1244 = vrot.lane.b32.xlu0 %v1233, 127
    %v1245 = vpop.permute.xlu0 %1244
    %1246 = vrot.lane.b32.xlu0 %v1237, 127
    %v1247 = vpop.permute.xlu0 %1246
    %1248 = vrot.lane.b32.xlu0 %v1241, 127
    %v1249 = vpop.permute.xlu0 %1248
    %v1250 = vsel %vm390, %v1243, %v1245
    %v1251 = vsel %vm390, %v1245, %v1247
    %v1252 = vsel %vm390, %v1247, %v1249
    %v1258 = vmul.f32 %v1214, %v1243
    %v1259 = vmul.f32 %v1215, %v1250
    %v1260 = vmul.f32 %v1216, %v1251
    %v1261 = vmul.f32 %v1217, %v1252
    %v1262 = vmul.f32 %v1218, %v1249
    %v1263 = vmul.f32 %v1219, %v1243
    %v1264 = vmul.f32 %v1220, %v1250
    %v1265 = vmul.f32 %v1221, %v1251
    %v1266 = vmul.f32 %v1222, %v1252
    %v1267 = vmul.f32 %v1223, %v1249
    %v1268 = vpack.c.bf16 %v1263, %v1258
    %v1269 = vpack.c.bf16 %v1264, %v1259
    %v1270 = vpack.c.bf16 %v1265, %v1260
    %v1271 = vpack.c.bf16 %v1266, %v1261
    %v1272 = vpack.c.bf16 %v1267, %v1262
    %1278 = vrot.lane.b32.xlu0 %v1268, 1
    %v1279 = vpop.permute.xlu0 %1278
    %1280 = vrot.lane.b32.xlu0 %v1269, 1
    %v1281 = vpop.permute.xlu0 %1280
    %1282 = vrot.lane.b32.xlu0 %v1270, 1
    %v1283 = vpop.permute.xlu0 %1282
    %1284 = vrot.lane.b32.xlu0 %v1271, 1
    %v1285 = vpop.permute.xlu0 %1284
    %1286 = vrot.lane.b32.xlu0 %v1272, 1
    %v1287 = vpop.permute.xlu0 %1286
    %v1288 = vsel %vm429, %v1279, %v1281
    %v1289 = vsel %vm429, %v1281, %v1283
    %v1290 = vsel %vm429, %v1283, %v1285
    %v1291 = vsel %vm429, %v1285, %v1287
    %1296 = vst [vmem:[#allocation5 + $0x60] sm:$0xff] %v1288
    %1297 = vst [vmem:[#allocation5 + $0x68] sm:$0xff] %v1289
    %1298 = vst [vmem:[#allocation5 + $0x70] sm:$0xff] %v1290
    %1299 = vst [vmem:[#allocation5 + $0x78] sm:$0xff] %v1291
    %v1300 = vld [vmem:[#allocation4 + $0x8] sm:$0xff]
    %v1301 = vld [vmem:[#allocation4 + $0x10] sm:$0xff]
    %v1302 = vld [vmem:[#allocation4 + $0x18] sm:$0xff]
    %v1303 = vld [vmem:[#allocation4 + $0x20] sm:$0xff]
    %v1304 = vld [vmem:[#allocation4 + $0x38] sm:$0xff]
    %v1305 = vld [vmem:[#allocation4 + $0x40] sm:$0xff]
    %v1306 = vld [vmem:[#allocation4 + $0x48] sm:$0xff]
    %v1307 = vld [vmem:[#allocation4 + $0x50] sm:$0xff]
    %v1308 = vpack.c.bf16 %v1304, %v1300
    %v1309 = vpack.c.bf16 %v1305, %v1301
    %v1310 = vpack.c.bf16 %v1306, %v1302
    %v1311 = vpack.c.bf16 %v1307, %v1303
    %1312 = vst [vmem:[#allocation5 + $0x80] sm:$0xff] %v1308
    %1313 = vst [vmem:[#allocation5 + $0x88] sm:$0xff] %v1309
    %1314 = vst [vmem:[#allocation5 + $0x90] sm:$0xff] %v1310
    %1315 = vst [vmem:[#allocation5 + $0x98] sm:$0xff] %v1311
    %v1316 = vld [vmem:[#allocation4 + $0x8] sm:$0xff]
    %v1317 = vld [vmem:[#allocation4 + $0x10] sm:$0xff]
    %v1318 = vld [vmem:[#allocation4 + $0x18] sm:$0xff]
    %v1319 = vld [vmem:[#allocation4 + $0x20] sm:$0xff]
    %v1320 = vld [vmem:[#allocation4 + $0x28] sm:$0xff]
    %v1321 = vld [vmem:[#allocation4 + $0x38] sm:$0xff]
    %v1322 = vld [vmem:[#allocation4 + $0x40] sm:$0xff]
    %v1323 = vld [vmem:[#allocation4 + $0x48] sm:$0xff]
    %v1324 = vld [vmem:[#allocation4 + $0x50] sm:$0xff]
    %v1325 = vld [vmem:[#allocation4 + $0x58] sm:$0xff]
    %v1326 = vld [vmem:[%s468] ss:$8 sm:$0xf]
    %v1328 = vlaneseq
    %v1329 = vshrl.u32 %v1328, 7
    %v1330 = vsub.s32 0, %v1329
    %v1331 = vrot.slane %v1326, %v1330
    %v1332 = vlaneseq
    %v1333 = vshrl.u32 %v1332, 7
    %v1334 = vsub.s32 1, %v1333
    %v1335 = vrot.slane %v1326, %v1334
    %v1336 = vlaneseq
    %v1337 = vshrl.u32 %v1336, 7
    %v1338 = vsub.s32 2, %v1337
    %v1339 = vrot.slane %v1326, %v1338
    %v1340 = vlaneseq
    %v1341 = vshrl.u32 %v1340, 7
    %v1342 = vsub.s32 3, %v1341
    %v1343 = vrot.slane %v1326, %v1342
    %1344 = vrot.lane.b32.xlu0 %v1331, 1
    %v1345 = vpop.permute.xlu0 %1344
    %1346 = vrot.lane.b32.xlu0 %v1335, 1
    %v1347 = vpop.permute.xlu0 %1346
    %1348 = vrot.lane.b32.xlu0 %v1339, 1
    %v1349 = vpop.permute.xlu0 %1348
    %1350 = vrot.lane.b32.xlu0 %v1343, 1
    %v1351 = vpop.permute.xlu0 %1350
    %v1352 = vsel %vm495, %v1345, %v1347
    %v1353 = vsel %vm495, %v1347, %v1349
    %v1354 = vsel %vm495, %v1349, %v1351
    %v1360 = vmul.f32 %v1316, %v1345
    %v1361 = vmul.f32 %v1317, %v1352
    %v1362 = vmul.f32 %v1318, %v1353
    %v1363 = vmul.f32 %v1319, %v1354
    %v1364 = vmul.f32 %v1320, %v1351
    %v1365 = vmul.f32 %v1321, %v1345
    %v1366 = vmul.f32 %v1322, %v1352
    %v1367 = vmul.f32 %v1323, %v1353
    %v1368 = vmul.f32 %v1324, %v1354
    %v1369 = vmul.f32 %v1325, %v1351
    %v1370 = vpack.c.bf16 %v1365, %v1360
    %v1371 = vpack.c.bf16 %v1366, %v1361
    %v1372 = vpack.c.bf16 %v1367, %v1362
    %v1373 = vpack.c.bf16 %v1368, %v1363
    %v1374 = vpack.c.bf16 %v1369, %v1364
    %1380 = vrot.lane.b32.xlu0 %v1370, 127
    %v1381 = vpop.permute.xlu0 %1380
    %1382 = vrot.lane.b32.xlu0 %v1371, 127
    %v1383 = vpop.permute.xlu0 %1382
    %1384 = vrot.lane.b32.xlu0 %v1372, 127
    %v1385 = vpop.permute.xlu0 %1384
    %1386 = vrot.lane.b32.xlu0 %v1373, 127
    %v1387 = vpop.permute.xlu0 %1386
    %1388 = vrot.lane.b32.xlu0 %v1374, 127
    %v1389 = vpop.permute.xlu0 %1388
    %v1390 = vsel %vm534, %v1381, %v1383
    %v1391 = vsel %vm534, %v1383, %v1385
    %v1392 = vsel %vm534, %v1385, %v1387
    %v1393 = vsel %vm534, %v1387, %v1389
    %1398 = vst [vmem:[#allocation5 + $0xa0] sm:$0xff] %v1390
    %1399 = vst [vmem:[#allocation5 + $0xa8] sm:$0xff] %v1391
    %1400 = vst [vmem:[#allocation5 + $0xb0] sm:$0xff] %v1392
    %1401 = vst [vmem:[#allocation5 + $0xb8] sm:$0xff] %v1393
    %v1402 = vld [vmem:[#allocation4 + $0x8] sm:$0xff]
    %v1403 = vld [vmem:[#allocation4 + $0x10] sm:$0xff]
    %v1404 = vld [vmem:[#allocation4 + $0x18] sm:$0xff]
    %v1405 = vld [vmem:[#allocation4 + $0x20] sm:$0xff]
    %v1406 = vld [vmem:[#allocation4 + $0x28] sm:$0xff]
    %v1407 = vld [vmem:[#allocation4 + $0x38] sm:$0xff]
    %v1408 = vld [vmem:[#allocation4 + $0x40] sm:$0xff]
    %v1409 = vld [vmem:[#allocation4 + $0x48] sm:$0xff]
    %v1410 = vld [vmem:[#allocation4 + $0x50] sm:$0xff]
    %v1411 = vld [vmem:[#allocation4 + $0x58] sm:$0xff]
    %v1412 = vld [vmem:[%s557] ss:$8 sm:$0xf]
    %v1414 = vlaneseq
    %v1415 = vshrl.u32 %v1414, 7
    %v1416 = vsub.s32 0, %v1415
    %v1417 = vrot.slane %v1412, %v1416
    %v1418 = vlaneseq
    %v1419 = vshrl.u32 %v1418, 7
    %v1420 = vsub.s32 1, %v1419
    %v1421 = vrot.slane %v1412, %v1420
    %v1422 = vlaneseq
    %v1423 = vshrl.u32 %v1422, 7
    %v1424 = vsub.s32 2, %v1423
    %v1425 = vrot.slane %v1412, %v1424
    %v1426 = vlaneseq
    %v1427 = vshrl.u32 %v1426, 7
    %v1428 = vsub.s32 3, %v1427
    %v1429 = vrot.slane %v1412, %v1428
    %1430 = vrot.lane.b32.xlu0 %v1417, 15
    %v1431 = vpop.permute.xlu0 %1430
    %1432 = vrot.lane.b32.xlu0 %v1421, 15
    %v1433 = vpop.permute.xlu0 %1432
    %1434 = vrot.lane.b32.xlu0 %v1425, 15
    %v1435 = vpop.permute.xlu0 %1434
    %1436 = vrot.lane.b32.xlu0 %v1429, 15
    %v1437 = vpop.permute.xlu0 %1436
    %v1438 = vsel %vm584, %v1431, %v1433
    %v1439 = vsel %vm584, %v1433, %v1435
    %v1440 = vsel %vm584, %v1435, %v1437
    %v1446 = vmul.f32 %v1402, %v1431
    %v1447 = vmul.f32 %v1403, %v1438
    %v1448 = vmul.f32 %v1404, %v1439
    %v1449 = vmul.f32 %v1405, %v1440
    %v1450 = vmul.f32 %v1406, %v1437
    %v1451 = vmul.f32 %v1407, %v1431
    %v1452 = vmul.f32 %v1408, %v1438
    %v1453 = vmul.f32 %v1409, %v1439
    %v1454 = vmul.f32 %v1410, %v1440
    %v1455 = vmul.f32 %v1411, %v1437
    %v1456 = vpack.c.bf16 %v1451, %v1446
    %v1457 = vpack.c.bf16 %v1452, %v1447
    %v1458 = vpack.c.bf16 %v1453, %v1448
    %v1459 = vpack.c.bf16 %v1454, %v1449
    %v1460 = vpack.c.bf16 %v1455, %v1450
    %1466 = vrot.lane.b32.xlu0 %v1456, 113
    %v1467 = vpop.permute.xlu0 %1466
    %1468 = vrot.lane.b32.xlu0 %v1457, 113
    %v1469 = vpop.permute.xlu0 %1468
    %1470 = vrot.lane.b32.xlu0 %v1458, 113
    %v1471 = vpop.permute.xlu0 %1470
    %1472 = vrot.lane.b32.xlu0 %v1459, 113
    %v1473 = vpop.permute.xlu0 %1472
    %1474 = vrot.lane.b32.xlu0 %v1460, 113
    %v1475 = vpop.permute.xlu0 %1474
    %v1476 = vsel %vm623, %v1467, %v1469
    %v1477 = vsel %vm623, %v1469, %v1471
    %v1478 = vsel %vm623, %v1471, %v1473
    %v1479 = vsel %vm623, %v1473, %v1475
    %1484 = vst [vmem:[#allocation5 + $0xc0] sm:$0xff] %v1476
    %1485 = vst [vmem:[#allocation5 + $0xc8] sm:$0xff] %v1477
    %1486 = vst [vmem:[#allocation5 + $0xd0] sm:$0xff] %v1478
    %1487 = vst [vmem:[#allocation5 + $0xd8] sm:$0xff] %v1479
    %v1488 = vld [vmem:[#allocation4 + $0x8] sm:$0xff]
    %v1489 = vld [vmem:[#allocation4 + $0x10] sm:$0xff]
    %v1490 = vld [vmem:[#allocation4 + $0x18] sm:$0xff]
    %v1491 = vld [vmem:[#allocation4 + $0x20] sm:$0xff]
    %v1492 = vld [vmem:[#allocation4 + $0x28] sm:$0xff]
    %v1493 = vld [vmem:[#allocation4 + $0x38] sm:$0xff]
    %v1494 = vld [vmem:[#allocation4 + $0x40] sm:$0xff]
    %v1495 = vld [vmem:[#allocation4 + $0x48] sm:$0xff]
    %v1496 = vld [vmem:[#allocation4 + $0x50] sm:$0xff]
    %v1497 = vld [vmem:[#allocation4 + $0x58] sm:$0xff]
    %v1498 = vld [vmem:[%s646] ss:$8 sm:$0xf]
    %v1500 = vlaneseq
    %v1501 = vshrl.u32 %v1500, 7
    %v1502 = vsub.s32 0, %v1501
    %v1503 = vrot.slane %v1498, %v1502
    %v1504 = vlaneseq
    %v1505 = vshrl.u32 %v1504, 7
    %v1506 = vsub.s32 1, %v1505
    %v1507 = vrot.slane %v1498, %v1506
    %v1508 = vlaneseq
    %v1509 = vshrl.u32 %v1508, 7
    %v1510 = vsub.s32 2, %v1509
    %v1511 = vrot.slane %v1498, %v1510
    %v1512 = vlaneseq
    %v1513 = vshrl.u32 %v1512, 7
    %v1514 = vsub.s32 3, %v1513
    %v1515 = vrot.slane %v1498, %v1514
    %1516 = vrot.lane.b32.xlu0 %v1503, 16
    %v1517 = vpop.permute.xlu0 %1516
    %1518 = vrot.lane.b32.xlu0 %v1507, 16
    %v1519 = vpop.permute.xlu0 %1518
    %1520 = vrot.lane.b32.xlu0 %v1511, 16
    %v1521 = vpop.permute.xlu0 %1520
    %1522 = vrot.lane.b32.xlu0 %v1515, 16
    %v1523 = vpop.permute.xlu0 %1522
    %v1524 = vsel %vm673, %v1517, %v1519
    %v1525 = vsel %vm673, %v1519, %v1521
    %v1526 = vsel %vm673, %v1521, %v1523
    %v1532 = vmul.f32 %v1488, %v1517
    %v1533 = vmul.f32 %v1489, %v1524
    %v1534 = vmul.f32 %v1490, %v1525
    %v1535 = vmul.f32 %v1491, %v1526
    %v1536 = vmul.f32 %v1492, %v1523
    %v1537 = vmul.f32 %v1493, %v1517
    %v1538 = vmul.f32 %v1494, %v1524
    %v1539 = vmul.f32 %v1495, %v1525
    %v1540 = vmul.f32 %v1496, %v1526
    %v1541 = vmul.f32 %v1497, %v1523
    %v1542 = vpack.c.bf16 %v1537, %v1532
    %v1543 = vpack.c.bf16 %v1538, %v1533
    %v1544 = vpack.c.bf16 %v1539, %v1534
    %v1545 = vpack.c.bf16 %v1540, %v1535
    %v1546 = vpack.c.bf16 %v1541, %v1536
    %1552 = vrot.lane.b32.xlu0 %v1542, 112
    %v1553 = vpop.permute.xlu0 %1552
    %1554 = vrot.lane.b32.xlu0 %v1543, 112
    %v1555 = vpop.permute.xlu0 %1554
    %1556 = vrot.lane.b32.xlu0 %v1544, 112
    %v1557 = vpop.permute.xlu0 %1556
    %1558 = vrot.lane.b32.xlu0 %v1545, 112
    %v1559 = vpop.permute.xlu0 %1558
    %1560 = vrot.lane.b32.xlu0 %v1546, 112
    %v1561 = vpop.permute.xlu0 %1560
    %v1562 = vsel %vm712, %v1553, %v1555
    %v1563 = vsel %vm712, %v1555, %v1557
    %v1564 = vsel %vm712, %v1557, %v1559
    %v1565 = vsel %vm712, %v1559, %v1561
    %1570 = vst [vmem:[#allocation5 + $0xe0] sm:$0xff] %v1562
    %1571 = vst [vmem:[#allocation5 + $0xe8] sm:$0xff] %v1563
    %1572 = vst [vmem:[#allocation5 + $0xf0] sm:$0xff] %v1564
    %1573 = vst [vmem:[#allocation5 + $0xf8] sm:$0xff] %v1565
    %v1574 = vld [vmem:[#allocation4 + $0x8] sm:$0xff]
    %v1575 = vld [vmem:[#allocation4 + $0x10] sm:$0xff]
    %v1576 = vld [vmem:[#allocation4 + $0x18] sm:$0xff]
    %v1577 = vld [vmem:[#allocation4 + $0x20] sm:$0xff]
    %v1578 = vld [vmem:[#allocation4 + $0x28] sm:$0xff]
    %v1579 = vld [vmem:[#allocation4 + $0x38] sm:$0xff]
    %v1580 = vld [vmem:[#allocation4 + $0x40] sm:$0xff]
    %v1581 = vld [vmem:[#allocation4 + $0x48] sm:$0xff]
    %v1582 = vld [vmem:[#allocation4 + $0x50] sm:$0xff]
    %v1583 = vld [vmem:[#allocation4 + $0x58] sm:$0xff]
    %v1584 = vld [vmem:[%s735] ss:$8 sm:$0xf]
    %v1586 = vlaneseq
    %v1587 = vshrl.u32 %v1586, 7
    %v1588 = vsub.s32 0, %v1587
    %v1589 = vrot.slane %v1584, %v1588
    %v1590 = vlaneseq
    %v1591 = vshrl.u32 %v1590, 7
    %v1592 = vsub.s32 1, %v1591
    %v1593 = vrot.slane %v1584, %v1592
    %v1594 = vlaneseq
    %v1595 = vshrl.u32 %v1594, 7
    %v1596 = vsub.s32 2, %v1595
    %v1597 = vrot.slane %v1584, %v1596
    %v1598 = vlaneseq
    %v1599 = vshrl.u32 %v1598, 7
    %v1600 = vsub.s32 3, %v1599
    %v1601 = vrot.slane %v1584, %v1600
    %1602 = vrot.lane.b32.xlu0 %v1589, 17
    %v1603 = vpop.permute.xlu0 %1602
    %1604 = vrot.lane.b32.xlu0 %v1593, 17
    %v1605 = vpop.permute.xlu0 %1604
    %1606 = vrot.lane.b32.xlu0 %v1597, 17
    %v1607 = vpop.permute.xlu0 %1606
    %1608 = vrot.lane.b32.xlu0 %v1601, 17
    %v1609 = vpop.permute.xlu0 %1608
    %v1610 = vsel %vm762, %v1603, %v1605
    %v1611 = vsel %vm762, %v1605, %v1607
    %v1612 = vsel %vm762, %v1607, %v1609
    %v1618 = vmul.f32 %v1574, %v1603
    %v1619 = vmul.f32 %v1575, %v1610
    %v1620 = vmul.f32 %v1576, %v1611
    %v1621 = vmul.f32 %v1577, %v1612
    %v1622 = vmul.f32 %v1578, %v1609
    %v1623 = vmul.f32 %v1579, %v1603
    %v1624 = vmul.f32 %v1580, %v1610
    %v1625 = vmul.f32 %v1581, %v1611
    %v1626 = vmul.f32 %v1582, %v1612
    %v1627 = vmul.f32 %v1583, %v1609
    %v1628 = vpack.c.bf16 %v1623, %v1618
    %v1629 = vpack.c.bf16 %v1624, %v1619
    %v1630 = vpack.c.bf16 %v1625, %v1620
    %v1631 = vpack.c.bf16 %v1626, %v1621
    %v1632 = vpack.c.bf16 %v1627, %v1622
    %1638 = vrot.lane.b32.xlu0 %v1628, 111
    %v1639 = vpop.permute.xlu0 %1638
    %1640 = vrot.lane.b32.xlu0 %v1629, 111
    %v1641 = vpop.permute.xlu0 %1640
    %1642 = vrot.lane.b32.xlu0 %v1630, 111
    %v1643 = vpop.permute.xlu0 %1642
    %1644 = vrot.lane.b32.xlu0 %v1631, 111
    %v1645 = vpop.permute.xlu0 %1644
    %1646 = vrot.lane.b32.xlu0 %v1632, 111
    %v1647 = vpop.permute.xlu0 %1646
    %v1648 = vsel %vm801, %v1639, %v1641
    %v1649 = vsel %vm801, %v1641, %v1643
    %v1650 = vsel %vm801, %v1643, %v1645
    %v1651 = vsel %vm801, %v1645, %v1647
    %1656 = vst [vmem:[#allocation5 + $0x100] sm:$0xff] %v1648
    %1657 = vst [vmem:[#allocation5 + $0x108] sm:$0xff] %v1649
    %1658 = vst [vmem:[#allocation5 + $0x110] sm:$0xff] %v1650
    %1659 = vst [vmem:[#allocation5 + $0x118] sm:$0xff] %v1651
    %v1660 = vld [vmem:[%s3] sm:$0xff]
    %v1661 = vld [vmem:[#allocation5] sm:$0xff]
    %v1662 = vld [vmem:[#allocation5 + $0x8] sm:$0xff]
    %v1663 = vld [vmem:[#allocation5 + $0x10] sm:$0xff]
    %v1664 = vld [vmem:[#allocation5 + $0x18] sm:$0xff]
    %v1665 = vld [vmem:[#allocation5 + $0x20] sm:$0xff]
    %v1666 = vld [vmem:[#allocation5 + $0x28] sm:$0xff]
    %v1667 = vld [vmem:[#allocation5 + $0x30] sm:$0xff]
    %v1668 = vld [vmem:[#allocation5 + $0x38] sm:$0xff]
    %v1669 = vld [vmem:[#allocation5 + $0x40] sm:$0xff]
    %v1670 = vld [vmem:[#allocation5 + $0x48] sm:$0xff]
    %v1671 = vld [vmem:[#allocation5 + $0x50] sm:$0xff]
    %v1672 = vld [vmem:[#allocation5 + $0x58] sm:$0xff]
    %v1673 = vld [vmem:[#allocation5 + $0x60] sm:$0xff]
    %v1674 = vld [vmem:[#allocation5 + $0x68] sm:$0xff]
    %v1675 = vld [vmem:[#allocation5 + $0x70] sm:$0xff]
    %v1676 = vld [vmem:[#allocation5 + $0x78] sm:$0xff]
    %v1677 = vld [vmem:[#allocation5 + $0x80] sm:$0xff]
    %v1678 = vld [vmem:[#allocation5 + $0x88] sm:$0xff]
    %v1679 = vld [vmem:[#allocation5 + $0x90] sm:$0xff]
    %v1680 = vld [vmem:[#allocation5 + $0x98] sm:$0xff]
    %v1681 = vld [vmem:[#allocation5 + $0xa0] sm:$0xff]
    %v1682 = vld [vmem:[#allocation5 + $0xa8] sm:$0xff]
    %v1683 = vld [vmem:[#allocation5 + $0xb0] sm:$0xff]
    %v1684 = vld [vmem:[#allocation5 + $0xb8] sm:$0xff]
    %v1685 = vld [vmem:[#allocation5 + $0xc0] sm:$0xff]
    %v1686 = vld [vmem:[#allocation5 + $0xc8] sm:$0xff]
    %v1687 = vld [vmem:[#allocation5 + $0xd0] sm:$0xff]
    %v1688 = vld [vmem:[#allocation5 + $0xd8] sm:$0xff]
    %v1689 = vld [vmem:[#allocation5 + $0xe0] sm:$0xff]
    %v1690 = vld [vmem:[#allocation5 + $0xe8] sm:$0xff]
    %v1691 = vld [vmem:[#allocation5 + $0xf0] sm:$0xff]
    %v1692 = vld [vmem:[#allocation5 + $0xf8] sm:$0xff]
    %v1693 = vld [vmem:[#allocation5 + $0x100] sm:$0xff]
    %v1694 = vld [vmem:[#allocation5 + $0x108] sm:$0xff]
    %v1695 = vld [vmem:[#allocation5 + $0x110] sm:$0xff]
    %v1696 = vld [vmem:[#allocation5 + $0x118] sm:$0xff]
    %v1697 = vld [vmem:[%s4] sm:$0xff]
    %1699 = vset.pattern.permute.xlu0 0
    %1700 = vperm.xlu0 %1699, %v1697
    %v1701 = vpop.permute.xlu0 %1700
    %v1704 = vunpack.c.l.b16 %v1660
    %v1705 = vunpack.c.h.b16 %v1660
    %v1706 = vpack.c.b16 %v1704, %v1704
    %v1707 = vpack.c.b16 %v1705, %v1705
    %v1710 = vsel %vm673, %v1707, 0
    %1712 = vmatprep.subr.bf16.mxu0 %v1662
    %1713 = vmatpush1.bf16.msra.mxu0 %v1661
    %1714 = vmatprep.subr.bf16.mxu0 %v1666
    %1715 = vmatpush1.bf16.msra.mxu0 %v1665
    %1716 = vmatprep.subr.bf16.mxu0 %v1670
    %1717 = vmatpush1.bf16.msra.mxu0 %v1669
    %1718 = vmatprep.subr.bf16.mxu0 %v1674
    %1719 = vmatpush1.bf16.msra.mxu0 %v1673
    %1720 = vmatprep.subr.bf16.mxu0 %v1678
    %1721 = vmatpush1.bf16.msra.mxu0 %v1677
    %1722 = vmatprep.subr.bf16.mxu0 %v1682
    %1723 = vmatpush1.bf16.msra.mxu0 %v1681
    %1724 = vmatprep.subr.bf16.mxu0 %v1686
    %1725 = vmatpush1.bf16.msra.mxu0 %v1685
    %1726 = vmatprep.subr.bf16.mxu0 %v1690
    %1727 = vmatpush1.bf16.msra.mxu0 %v1689
    %1728 = vmatprep.subr.bf16.mxu0 %v1694
    %1729 = vmatpush1.bf16.msra.mxu0 %v1693
    %1730 = vmatprep.subr.bf16.mxu0 0
    %1731 = vmatpush1.bf16.msra.mxu0 0
    %1732 = vmatprep.subr.bf16.mxu0 0
    %1733 = vmatpush1.bf16.msra.mxu0 0
    %1734 = vmatprep.subr.bf16.mxu0 0
    %1735 = vmatpush1.bf16.msra.mxu0 0
    %1736 = vmatprep.subr.bf16.mxu0 0
    %1737 = vmatpush1.bf16.msra.mxu0 0
    %1738 = vmatprep.subr.bf16.mxu0 0
    %1739 = vmatpush1.bf16.msra.mxu0 0
    %1740 = vmatprep.subr.bf16.mxu0 0
    %1741 = vmatpush1.bf16.msra.mxu0 0
    %1742 = vmatprep.subr.bf16.mxu0 0
    %1743 = vmatpush1.bf16.msra.mxu0 0
    %1744 = vmatprep.mubr.bf16.mxu0 %v1710
    %1745 = vmatmul.mubr.bf16.gmra.mrb[0].mxu0 %v1706
    %v1746 = vpop.f32.mrb[0].mxu0
    %v1747 = vadd.f32 %v1701, %v1746
    %v1748 = vpop.f32.mrb[0].mxu0
    %v1749 = vadd.f32 %v1701, %v1748
    %v1750 = vpop.f32.mrb[0].mxu0
    %v1751 = vpop.f32.mrb[0].mxu0
    %1752 = vdwg.mxu0
    %1753 = vmatprep.subr.bf16.mxu0 %v1664
    %1754 = vmatpush1.bf16.msra.mxu0 %v1663
    %1755 = vmatprep.subr.bf16.mxu0 %v1668
    %1756 = vmatpush1.bf16.msra.mxu0 %v1667
    %1757 = vmatprep.subr.bf16.mxu0 %v1672
    %1758 = vmatpush1.bf16.msra.mxu0 %v1671
    %1759 = vmatprep.subr.bf16.mxu0 %v1676
    %1760 = vmatpush1.bf16.msra.mxu0 %v1675
    %1761 = vmatprep.subr.bf16.mxu0 %v1680
    %1762 = vmatpush1.bf16.msra.mxu0 %v1679
    %1763 = vmatprep.subr.bf16.mxu0 %v1684
    %1764 = vmatpush1.bf16.msra.mxu0 %v1683
    %1765 = vmatprep.subr.bf16.mxu0 %v1688
    %1766 = vmatpush1.bf16.msra.mxu0 %v1687
    %1767 = vmatprep.subr.bf16.mxu0 %v1692
    %1768 = vmatpush1.bf16.msra.mxu0 %v1691
    %1769 = vmatprep.subr.bf16.mxu0 %v1696
    %1770 = vmatpush1.bf16.msra.mxu0 %v1695
    %1771 = vmatprep.subr.bf16.mxu0 0
    %1772 = vmatpush1.bf16.msra.mxu0 0
    %1773 = vmatprep.subr.bf16.mxu0 0
    %1774 = vmatpush1.bf16.msra.mxu0 0
    %1775 = vmatprep.subr.bf16.mxu0 0
    %1776 = vmatpush1.bf16.msra.mxu0 0
    %1777 = vmatprep.subr.bf16.mxu0 0
    %1778 = vmatpush1.bf16.msra.mxu0 0
    %1779 = vmatprep.subr.bf16.mxu0 0
    %1780 = vmatpush1.bf16.msra.mxu0 0
    %1781 = vmatprep.subr.bf16.mxu0 0
    %1782 = vmatpush1.bf16.msra.mxu0 0
    %1783 = vmatprep.subr.bf16.mxu0 0
    %1784 = vmatpush1.bf16.msra.mxu0 0
    %1785 = vmatprep.mubr.bf16.mxu0 %v1710
    %1786 = vmatmul.mubr.bf16.gmra.mrb[0].mxu0 %v1706
    %v1787 = vpop.f32.mrb[0].mxu0
    %v1788 = vadd.f32 %v1701, %v1787
    %v1789 = vpop.f32.mrb[0].mxu0
    %v1790 = vadd.f32 %v1701, %v1789
    %v1791 = vpop.f32.mrb[0].mxu0
    %v1792 = vpop.f32.mrb[0].mxu0
    %1793 = vdwg.mxu0
    %v1794 = vmax.f32 %v1747, 0.0
    %v1795 = vmax.f32 %v1749, 0.0
    %v1796 = vmax.f32 %v1788, 0.0
    %v1797 = vmax.f32 %v1790, 0.0
    %1798 = vst [vmem:[#allocation11] sm:$0xff] %v1794
    %1799 = vst [vmem:[#allocation11 + $0x8] sm:$0xff] %v1795
    %1800 = vst [vmem:[#allocation11 + $0x10] sm:$0xff] %v1796
    %1801 = vst [vmem:[#allocation11 + $0x18] sm:$0xff] %v1797
    // Predicated region
    $region38: #{tpu_custom_call.1} parent=1 // pred_check
      _
    $region39: #{tpu_custom_call.1} parent=1 // pred_check_branch
      %1803 = sbr.rel (0) target = $region41
    $region40: #{tpu_custom_call.1} parent=1 // pred_region
      %s1805 = ssub.s32 512, 512
      %1806 = vsyncadd [#allocation8], %s1805
      %s1808 = sshll.u32 [#allocation11], 4
      %s1809 = int_to_ptr.vmem [resolvable:$true] %s1808
      %1811 = dma.vmem_to_hbm [thread:$0]  %s1809, 512, %s6, [#allocation8]
    $region41: #{tpu_custom_call.1} parent=1 // pred_fallthru
      _
    // Predicated region
    $region42: #{tpu_custom_call.1} parent=1 // pred_check
      _
    $region43: #{tpu_custom_call.1} parent=1 // pred_check_branch
      %1813 = sbr.rel (0) target = $region45
    $region44: #{tpu_custom_call.1} parent=1 // pred_region
      %1814 = dma.done [#allocation8], 512
    $region45: #{tpu_custom_call.1} parent=1 // pred_fallthru
      _
    %1815 = vsyncpa [#allocation7], 1
    %1816 = vsyncpa [#allocation10], 1
    %1817 = vsyncpa [#allocation8], 1

</llo_original>
